<compile_context>
chip_gen: v7x
topology: tpu7x:2x2x1
jax: 0.10.0
libtpu: 0.0.40
codegen_flags: <defaults>
</compile_context>

<pallas_src>
import functools

import jax
import jax.numpy as jnp
from jax import lax
from jax.experimental import pallas as pl
from jax.experimental.pallas import tpu as pltpu


# ----------------------------------------------------------------------------- helpers
def fold_conv_bn(w_hwio, gamma, beta, mean, var, eps=1e-5):
    """Fold BN (running stats) into the conv weight; return bf16 weight + f32 bias."""
    scale = gamma / jnp.sqrt(var + eps)                        # (Co,)
    bias = beta - mean * scale                                 # (Co,)
    w_folded = (w_hwio * scale[None, None, None, :]).astype(jnp.bfloat16)
    return w_folded, bias.astype(jnp.float32)


def _vmem_capacity_bytes():
    try:
        info = pltpu.get_tpu_info()
        cap = getattr(info, "vmem_capacity_bytes", None)
        if cap:
            return int(cap)
    except Exception:
        pass
    return 64 * 2**20                                          # conservative (v7x) fallback


def _vmem_step_bytes(th, wp, cin, cmid, cout, out_bytes):
    """Rough per-grid-step VMEM footprint estimate for the row-tile picker."""
    r1, r2 = th + 4, th + 2
    m1, m2, mo = r1 * wp, r2 * wp, th * wp
    b = 2 * (th * 2 * wp * 2 * cin) * 2                        # center input block (bf16, 2 buf)
    b += 2 * 2 * (2 * 2 * wp * 2 * cin) * 2                    # two halo blocks (bf16, 2 buf)
    b += m1 * cin * 4 * 3 + m1 * 3 * cin * 2                   # pooled + taps (f32) + slab1 (bf16)
    b += m2 * cmid * 4 * 3 + m2 * 3 * cmid * 2                 # y1 + taps (f32) + slab2 (bf16)
    b += mo * cout * 4                                         # f32 accumulator
    b += 2 * mo * cout * out_bytes                             # output block (2 buf)
    b += 2 * 2 * (9 * cin * cmid + 9 * cmid * cout)            # bf16 weights (2 buf)
    return b


def _pick_row_tile(hp, wp, cin, cmid, cout, out_bytes, budget_bytes):
    cands = [d for d in range(hp, 0, -1) if hp % d == 0 and (d % 2 == 0 or d == hp)]
    for d in cands:
        if _vmem_step_bytes(d, wp, cin, cmid, cout, out_bytes) <= budget_bytes:
            return d
    return cands[-1]


# ------------------------------------------------------------------------------ kernel
def _conv3x3_bias_relu(flat, wp, w_ref, b_ref):
    """3x3 conv, SAME in W / VALID over the (halo-extended) rows, + bias + ReLU.

    flat:  (R*wp, C) f32 row-flattened activation, R rows incl. +-1 halo row.
    w_ref: (3, 3*C, Cout) bf16 -- per-kh matrices, channel order (kw, ci).
    b_ref: (1, Cout) f32.
    Returns ((R-2)*wp, Cout) f32 (post-ReLU).
    """
    m, _ = flat.shape
    mo = m - 2 * wp
    # Horizontal +-1 taps via an XLU roll of the flattened rows. The row-wrap
    # contamination lands exactly on the columns SAME-padding zeroes anyway.
    widx = lax.broadcasted_iota(jnp.int32, (m, 1), 0) % wp
    x_l = jnp.where(widx == 0, 0.0, pltpu.roll(flat, shift=1, axis=0))          # x[., w-1]
    x_r = jnp.where(widx == wp - 1, 0.0, pltpu.roll(flat, shift=m - 1, axis=0))  # x[., w+1]
    xcat = jnp.concatenate(
        [x_l.astype(jnp.bfloat16), flat.astype(jnp.bfloat16), x_r.astype(jnp.bfloat16)],
        axis=-1)                                                # (m, 3C) bf16
    acc = jnp.zeros((mo, w_ref.shape[-1]), jnp.float32)
    for kh in range(3):                                         # 3 accumulating MXU dots, K=3C
        acc = acc + jnp.dot(xcat[kh * wp:kh * wp + mo, :], w_ref[kh],
                            preferred_element_type=jnp.float32)
    return jnp.maximum(acc + b_ref[...], 0.0)                   # bias + ReLU in f32


def down_kernel(xc_ref, xa_ref, xb_ref, w1_ref, b1_ref, w2_ref, b2_ref, o_ref):
    # xc_ref: (1, Th, 2, Wp, 2*Cin) bf16  -- this tile's pooled rows (pool window split)
    # xa_ref/xb_ref: (1, 2, 2, Wp, 2*Cin) bf16 -- 2-row halos above/below (edge-clamped)
    # w1_ref: (3, 3*Cin, Cmid) bf16, b1_ref: (1, Cmid) f32
    # w2_ref: (3, 3*Cmid, Cout) bf16, b2_ref: (1, Cout) f32
    # o_ref: (1, Th, Wp, Cout)
    r = pl.program_id(1)
    nr = pl.num_programs(1)
    _, th, _, wp, c2 = xc_ref.shape
    cin = c2 // 2

    def pool(block):                      # (rows, 2, Wp, 2*Cin) bf16 -> (rows, Wp, Cin) f32
        v = block.astype(jnp.float32)
        v = jnp.maximum(v[:, 0], v[:, 1])                        # max over H parity
        return jnp.maximum(v[..., :cin], v[..., cin:])           # max over W parity

    pc = pool(xc_ref[0])
    pa = pool(xa_ref[0]) * (r > 0).astype(jnp.float32)           # zero rows above the image
    pb = pool(xb_ref[0]) * (r < nr - 1).astype(jnp.float32)      # zero rows below the image

    xp = jnp.concatenate([pa, pc, pb], axis=0)                   # (Th+4, Wp, Cin) f32
    flat0 = xp.reshape((th + 4) * wp, cin)

    y1 = _conv3x3_bias_relu(flat0, wp, w1_ref, b1_ref)           # ((Th+2)*Wp, Cmid) f32

    # conv2's SAME padding pads y1 (not the raw input) with zeros at the image edges,
    # so the extra conv1 rows computed past the image border must be zeroed.
    fidx = lax.broadcasted_iota(jnp.int32, ((th + 2) * wp, 1), 0)
    edge = jnp.logical_or(jnp.logical_and(r == 0, fidx < wp),
                          jnp.logical_and(r == nr - 1, fidx >= (th + 1) * wp))
    y1 = jnp.where(edge, 0.0, y1)

    # TODO(synk): CPCA attention (not defined in the provided source) treated as identity.

    y2 = _conv3x3_bias_relu(y1, wp, w2_ref, b2_ref)              # (Th*Wp, Cout) f32
    o_ref[0] = y2.reshape(th, wp, -1).astype(o_ref.dtype)


# ----------------------------------------------------------------------------- wrappers
def down_forward_nhwc(x_nhwc, w1, g1, be1, m1, v1, w2, g2, be2, m2, v2,
                      eps=1e-5, row_tile=None, out_dtype=jnp.float32):
    """x_nhwc: (N, H, W, Cin) -> (N, H/2, W/2, Cout). Keep the model NHWC end-to-end to
    avoid any layout transposes around this kernel."""
    N, H, W, Cin = x_nhwc.shape
    assert H % 2 == 0 and W % 2 == 0, "even spatial dims required (MaxPool2d(2))"
    Hp, Wp = H // 2, W // 2
    Cmid = w1.shape[3]
    Cout = w2.shape[3]

    # Offline BN folding + weight prep: (3, 3*C, Co) bf16, channel order (kw, ci).
    w1f, b1 = fold_conv_bn(w1, g1, be1, m1, v1, eps)
    w2f, b2 = fold_conv_bn(w2, g2, be2, m2, v2, eps)
    w1m = w1f.reshape(3, 3 * Cin, Cmid)
    w2m = w2f.reshape(3, 3 * Cmid, Cout)
    b1m = b1.reshape(1, Cmid)
    b2m = b2.reshape(1, Cout)

    # bf16 HBM stream (cast fuses with whatever produced x); the pool-window split
    # (N,H,W,C) -> (N,Hp,2,Wp,2C) is a free row-major reshape.
    xq = x_nhwc.astype(jnp.bfloat16).reshape(N, Hp, 2, Wp, 2 * Cin)

    out_bytes = jnp.dtype(out_dtype).itemsize
    cap = _vmem_capacity_bytes()
    if row_tile is None:
        row_tile = _pick_row_tile(Hp, Wp, Cin, Cmid, Cout, out_bytes,
                                  budget_bytes=int(0.40 * cap))
    Th = int(row_tile)
    assert Hp % Th == 0 and (Th % 2 == 0 or Th == Hp), (Hp, Th)
    nrt = Hp // Th
    h2 = Th // 2                       # halo block (2 rows) index stride per row tile

    halo_blk = (1, 2, 2, Wp, 2 * Cin)
    in_specs = [
        # center rows of this tile
        pl.BlockSpec((1, Th, 2, Wp, 2 * Cin), lambda n, t: (n, t, 0, 0, 0)),
        # 2-row halo above (clamped to 0 at the top edge; zero-masked in-kernel)
        pl.BlockSpec(halo_blk, lambda n, t: (n, jnp.maximum(t * h2 - 1, 0), 0, 0, 0)),
        # 2-row halo below (clamped at the bottom edge; zero-masked in-kernel)
        pl.BlockSpec(halo_blk,
                     lambda n, t: (n, jnp.maximum(jnp.minimum((t + 1) * h2, Hp // 2 - 1), 0),
                                   0, 0, 0)),
        pl.BlockSpec((3, 3 * Cin, Cmid), lambda n, t: (0, 0, 0)),
        pl.BlockSpec((1, Cmid), lambda n, t: (0, 0)),
        pl.BlockSpec((3, 3 * Cmid, Cout), lambda n, t: (0, 0, 0)),
        pl.BlockSpec((1, Cout), lambda n, t: (0, 0)),
    ]
    out_spec = pl.BlockSpec((1, Th, Wp, Cout), lambda n, t: (n, t, 0, 0))

    flops = 2 * N * Hp * Wp * 9 * (Cin * Cmid + Cmid * Cout)
    bytes_accessed = (xq.size * 2 + (w1m.size + w2m.size) * 2
                      + (b1m.size + b2m.size) * 4 + N * Hp * Wp * Cout * out_bytes)

    out = pl.pallas_call(
        down_kernel,
        out_shape=jax.ShapeDtypeStruct((N, Hp, Wp, Cout), out_dtype),
        grid_spec=pltpu.PrefetchScalarGridSpec(
            num_scalar_prefetch=0,
            grid=(N, nrt),
            in_specs=in_specs,
            out_specs=out_spec,
        ),
        compiler_params=pltpu.CompilerParams(
            dimension_semantics=("parallel", "parallel"),
            vmem_limit_bytes=int(min(0.80 * cap, 120 * 2**20)),
        ),
        cost_estimate=pl.CostEstimate(flops=flops, transcendentals=0,
                                      bytes_accessed=bytes_accessed),
    )(xq, xq, xq, w1m, b1m, w2m, b2m)
    return out


def down_forward(x_nchw, w1, g1, be1, m1, v1, w2, g2, be2, m2, v2,
                 eps=1e-5, row_tile=None, out_dtype=jnp.float32):
    """PyTorch-layout entry: (N, Cin, H, W) -> (N, Cout, H/2, W/2).
    The NCHW<->NHWC transposes here are a full extra HBM pass each; prefer
    down_forward_nhwc and an NHWC model layout."""
    x = jnp.transpose(x_nchw, (0, 2, 3, 1))
    out = down_forward_nhwc(x, w1, g1, be1, m1, v1, w2, g2, be2, m2, v2,
                            eps=eps, row_tile=row_tile, out_dtype=out_dtype)
    return jnp.transpose(out, (0, 3, 1, 2))


# ---------------------------------------------------------------------------- reference
def ref_forward(x_nchw, w1, g1, be1, m1, v1, w2, g2, be2, m2, v2,
                eps=1e-5, out_dtype=jnp.float32):
    """Pure-JAX reference mirroring the kernel's exact cast points (bf16 operands,
    f32 accumulation/bias/ReLU)."""
    w1f, b1 = fold_conv_bn(w1, g1, be1, m1, v1, eps)
    w2f, b2 = fold_conv_bn(w2, g2, be2, m2, v2, eps)
    x = jnp.transpose(x_nchw, (0, 2, 3, 1)).astype(jnp.bfloat16)
    N, H, W, C = x.shape
    xp = x.reshape(N, H // 2, 2, W // 2, 2, C).max(axis=(2, 4))   # bf16 max-pool (exact)
    dn = ("NHWC", "HWIO", "NHWC")
    y = lax.conv_general_dilated(xp, w1f, (1, 1), "SAME", dimension_numbers=dn,
                                 preferred_element_type=jnp.float32)
    y = jnp.maximum(y + b1[None, None, None, :], 0.0)
    y = lax.conv_general_dilated(y.astype(jnp.bfloat16), w2f, (1, 1), "SAME",
                                 dimension_numbers=dn,
                                 preferred_element_type=jnp.float32)
    y = jnp.maximum(y + b2[None, None, None, :], 0.0)
    return jnp.transpose(y.astype(out_dtype), (0, 3, 1, 2))


# --------------------------------------------------------------------------------- main
if __name__ == "__main__":
    N, Cin, H, W = 2, 4, 16, 16
    Cout = 8
    Cmid = Cout  # DoubleConv default: mid_channels = out_channels

    key = jax.random.PRNGKey(0)
    kx, kw1, kw2 = jax.random.split(key, 3)

    x = jax.random.normal(kx, (N, Cin, H, W), dtype=jnp.float32)

    # Conv weights stored HWIO (PyTorch Conv2d weight is OIHW).
    w1 = 0.1 * jax.random.normal(kw1, (3, 3, Cin, Cmid), dtype=jnp.float32)
    w2 = 0.1 * jax.random.normal(kw2, (3, 3, Cmid, Cout), dtype=jnp.float32)

    # Deterministic BatchNorm parameters (inference / running-stats semantics).
    g1 = 1.0 + 0.1 * jnp.arange(Cmid, dtype=jnp.float32)
    be1 = 0.05 * jnp.arange(Cmid, dtype=jnp.float32)
    m1 = 0.01 * jnp.arange(Cmid, dtype=jnp.float32)
    v1 = 1.0 + 0.1 * jnp.arange(Cmid, dtype=jnp.float32)
    g2 = 1.0 - 0.02 * jnp.arange(Cout, dtype=jnp.float32)
    be2 = -0.03 * jnp.arange(Cout, dtype=jnp.float32)
    m2 = 0.02 * jnp.arange(Cout, dtype=jnp.float32)
    v2 = 1.0 + 0.05 * jnp.arange(Cout, dtype=jnp.float32)

    args = (x, w1, g1, be1, m1, v1, w2, g2, be2, m2, v2)

    ref = ref_forward(*args)

    # Forced small row tile (2 pooled rows -> 4 row tiles per image) exercises the
    # top-edge, interior and bottom-edge halo paths.
    out_tiled = jax.block_until_ready(
        jax.jit(functools.partial(down_forward, row_tile=2))(*args))
    # Auto row-tile selection (one tile per image at these toy shapes).
    out_auto = jax.block_until_ready(jax.jit(down_forward)(*args))

    assert out_tiled.shape == (N, Cout, H // 2, W // 2), out_tiled.shape
    assert out_auto.shape == (N, Cout, H // 2, W // 2), out_auto.shape
    for out in (out_tiled, out_auto):
        err = float(jnp.max(jnp.abs(out - ref)))
        assert jnp.allclose(out, ref, atol=1e-2, rtol=1e-2), err

    print("KERNEL_OK")
</pallas_src>

<mosaic_0001>
module attributes {stable_mosaic.version = 11 : i64} {
  func.func @down_kernel(%arg0: i32, %arg1: i32, %arg2: memref<1x2x2x8x8xbf16, #tpu.memory_space<vmem>>, %arg3: memref<1x2x2x8x8xbf16, #tpu.memory_space<vmem>>, %arg4: memref<1x2x2x8x8xbf16, #tpu.memory_space<vmem>>, %arg5: memref<3x12x8xbf16, #tpu.memory_space<vmem>>, %arg6: memref<1x8xf32, #tpu.memory_space<vmem>>, %arg7: memref<3x24x8xbf16, #tpu.memory_space<vmem>>, %arg8: memref<1x8xf32, #tpu.memory_space<vmem>>, %arg9: memref<1x2x8x8xf32, #tpu.memory_space<vmem>>) attributes {dimension_semantics = [#tpu.dimension_semantics<parallel>, #tpu.dimension_semantics<parallel>], iteration_bounds = array<i64: 2, 4>, scalar_prefetch = 0 : i64, scratch_operands = 0 : i64, tpu.core_type = #tpu.core_type<tc>, window_params = [{transform_indices = @transform_0, window_bounds = array<i64: 1, 2, 2, 8, 8>}, {transform_indices = @transform_1, window_bounds = array<i64: 1, 2, 2, 8, 8>}, {transform_indices = @transform_2, window_bounds = array<i64: 1, 2, 2, 8, 8>}, {pipeline_mode = #tpu.pipeline_mode<synchronous>, transform_indices = @transform_3, window_bounds = array<i64: 3, 12, 8>}, {pipeline_mode = #tpu.pipeline_mode<synchronous>, transform_indices = @transform_4, window_bounds = array<i64: 1, 8>}, {pipeline_mode = #tpu.pipeline_mode<synchronous>, transform_indices = @transform_5, window_bounds = array<i64: 3, 24, 8>}, {pipeline_mode = #tpu.pipeline_mode<synchronous>, transform_indices = @transform_6, window_bounds = array<i64: 1, 8>}, {transform_indices = @transform_7, window_bounds = array<i64: 1, 2, 8, 8>}]} {
    %c0 = arith.constant 0 : index
    %c0_0 = arith.constant 0 : index
    %c0_1 = arith.constant 0 : index
    %c0_2 = arith.constant 0 : index
    %c0_3 = arith.constant 0 : index
    %0 = vector.load %arg2[%c0, %c0_0, %c0_1, %c0_2, %c0_3] : memref<1x2x2x8x8xbf16, #tpu.memory_space<vmem>>, vector<1x2x2x8x8xbf16>
    %1 = vector.shape_cast %0 : vector<1x2x2x8x8xbf16> to vector<2x2x8x8xbf16>
    %2 = arith.extf %1 : vector<2x2x8x8xbf16> to vector<2x2x8x8xf32>
    %3 = vector.extract_strided_slice %2 {offsets = [0, 0, 0, 0], sizes = [2, 1, 8, 8], strides = [1, 1, 1, 1]} : vector<2x2x8x8xf32> to vector<2x1x8x8xf32>
    %4 = vector.shape_cast %3 : vector<2x1x8x8xf32> to vector<2x8x8xf32>
    %5 = vector.extract_strided_slice %2 {offsets = [0, 1, 0, 0], sizes = [2, 1, 8, 8], strides = [1, 1, 1, 1]} : vector<2x2x8x8xf32> to vector<2x1x8x8xf32>
    %6 = vector.shape_cast %5 : vector<2x1x8x8xf32> to vector<2x8x8xf32>
    %7 = arith.maximumf %4, %6 : vector<2x8x8xf32>
    %8 = vector.extract_strided_slice %7 {offsets = [0, 0, 0], sizes = [2, 8, 4], strides = [1, 1, 1]} : vector<2x8x8xf32> to vector<2x8x4xf32>
    %9 = vector.extract_strided_slice %7 {offsets = [0, 0, 4], sizes = [2, 8, 4], strides = [1, 1, 1]} : vector<2x8x8xf32> to vector<2x8x4xf32>
    %10 = arith.maximumf %8, %9 : vector<2x8x4xf32>
    %c0_4 = arith.constant 0 : index
    %c0_5 = arith.constant 0 : index
    %c0_6 = arith.constant 0 : index
    %c0_7 = arith.constant 0 : index
    %c0_8 = arith.constant 0 : index
    %11 = vector.load %arg3[%c0_4, %c0_5, %c0_6, %c0_7, %c0_8] : memref<1x2x2x8x8xbf16, #tpu.memory_space<vmem>>, vector<1x2x2x8x8xbf16>
    %12 = vector.shape_cast %11 : vector<1x2x2x8x8xbf16> to vector<2x2x8x8xbf16>
    %13 = arith.extf %12 : vector<2x2x8x8xbf16> to vector<2x2x8x8xf32>
    %14 = vector.extract_strided_slice %13 {offsets = [0, 0, 0, 0], sizes = [2, 1, 8, 8], strides = [1, 1, 1, 1]} : vector<2x2x8x8xf32> to vector<2x1x8x8xf32>
    %15 = vector.shape_cast %14 : vector<2x1x8x8xf32> to vector<2x8x8xf32>
    %16 = vector.extract_strided_slice %13 {offsets = [0, 1, 0, 0], sizes = [2, 1, 8, 8], strides = [1, 1, 1, 1]} : vector<2x2x8x8xf32> to vector<2x1x8x8xf32>
    %17 = vector.shape_cast %16 : vector<2x1x8x8xf32> to vector<2x8x8xf32>
    %18 = arith.maximumf %15, %17 : vector<2x8x8xf32>
    %19 = vector.extract_strided_slice %18 {offsets = [0, 0, 0], sizes = [2, 8, 4], strides = [1, 1, 1]} : vector<2x8x8xf32> to vector<2x8x4xf32>
    %20 = vector.extract_strided_slice %18 {offsets = [0, 0, 4], sizes = [2, 8, 4], strides = [1, 1, 1]} : vector<2x8x8xf32> to vector<2x8x4xf32>
    %21 = arith.maximumf %19, %20 : vector<2x8x4xf32>
    %c0_i32 = arith.constant 0 : i32
    %22 = arith.cmpi sgt, %arg1, %c0_i32 : i32
    %23 = arith.extui %22 : i1 to i32
    %24 = arith.sitofp %23 : i32 to f32
    %25 = vector.broadcast %24 : f32 to vector<2x8x4xf32>
    %26 = arith.mulf %21, %25 : vector<2x8x4xf32>
    %c0_9 = arith.constant 0 : index
    %c0_10 = arith.constant 0 : index
    %c0_11 = arith.constant 0 : index
    %c0_12 = arith.constant 0 : index
    %c0_13 = arith.constant 0 : index
    %27 = vector.load %arg4[%c0_9, %c0_10, %c0_11, %c0_12, %c0_13] : memref<1x2x2x8x8xbf16, #tpu.memory_space<vmem>>, vector<1x2x2x8x8xbf16>
    %28 = vector.shape_cast %27 : vector<1x2x2x8x8xbf16> to vector<2x2x8x8xbf16>
    %29 = arith.extf %28 : vector<2x2x8x8xbf16> to vector<2x2x8x8xf32>
    %30 = vector.extract_strided_slice %29 {offsets = [0, 0, 0, 0], sizes = [2, 1, 8, 8], strides = [1, 1, 1, 1]} : vector<2x2x8x8xf32> to vector<2x1x8x8xf32>
    %31 = vector.shape_cast %30 : vector<2x1x8x8xf32> to vector<2x8x8xf32>
    %32 = vector.extract_strided_slice %29 {offsets = [0, 1, 0, 0], sizes = [2, 1, 8, 8], strides = [1, 1, 1, 1]} : vector<2x2x8x8xf32> to vector<2x1x8x8xf32>
    %33 = vector.shape_cast %32 : vector<2x1x8x8xf32> to vector<2x8x8xf32>
    %34 = arith.maximumf %31, %33 : vector<2x8x8xf32>
    %35 = vector.extract_strided_slice %34 {offsets = [0, 0, 0], sizes = [2, 8, 4], strides = [1, 1, 1]} : vector<2x8x8xf32> to vector<2x8x4xf32>
    %36 = vector.extract_strided_slice %34 {offsets = [0, 0, 4], sizes = [2, 8, 4], strides = [1, 1, 1]} : vector<2x8x8xf32> to vector<2x8x4xf32>
    %37 = arith.maximumf %35, %36 : vector<2x8x4xf32>
    %c3_i32 = arith.constant 3 : i32
    %38 = arith.cmpi slt, %arg1, %c3_i32 : i32
    %39 = arith.extui %38 : i1 to i32
    %40 = arith.sitofp %39 : i32 to f32
    %41 = vector.broadcast %40 : f32 to vector<2x8x4xf32>
    %42 = arith.mulf %37, %41 : vector<2x8x4xf32>
    %43 = tpu.concatenate %26, %10, %42 in 0 : vector<2x8x4xf32>, vector<2x8x4xf32>, vector<2x8x4xf32> -> vector<6x8x4xf32>
    %44 = vector.shape_cast %43 : vector<6x8x4xf32> to vector<48x4xf32>
    %45 = tpu.iota {dimensions = array<i32: 0>} : vector<48x1xi32>
    %c8_i32 = arith.constant 8 : i32
    %c0_i32_14 = arith.constant 0 : i32
    %46 = arith.cmpi eq, %c8_i32, %c0_i32_14 : i32
    %c1_i32 = arith.constant 1 : i32
    %47 = arith.select %46, %c1_i32, %c8_i32 : i32
    %48 = vector.broadcast %47 : i32 to vector<48x1xi32>
    %49 = arith.remsi %45, %48 : vector<48x1xi32>
    %c0_i32_15 = arith.constant 0 : i32
    %50 = vector.broadcast %c0_i32_15 : i32 to vector<48x1xi32>
    %51 = arith.cmpi ne, %49, %50 : vector<48x1xi32>
    %c0_i32_16 = arith.constant 0 : i32
    %52 = vector.broadcast %c0_i32_16 : i32 to vector<48x1xi32>
    %53 = arith.cmpi slt, %49, %52 : vector<48x1xi32>
    %c0_i32_17 = arith.constant 0 : i32
    %54 = arith.cmpi slt, %47, %c0_i32_17 : i32
    %55 = vector.broadcast %54 : i1 to vector<48x1xi1>
    %56 = vector.broadcast %55 : vector<48x1xi1> to vector<48x1xi1>
    %57 = arith.xori %53, %56 : vector<48x1xi1>
    %58 = arith.andi %57, %51 : vector<48x1xi1>
    %59 = vector.broadcast %47 : i32 to vector<48x1xi32>
    %60 = arith.addi %49, %59 : vector<48x1xi32>
    %61 = arith.select %58, %60, %49 : vector<48x1xi1>, vector<48x1xi32>
    %c0_i32_18 = arith.constant 0 : i32
    %62 = vector.broadcast %c0_i32_18 : i32 to vector<48x1xi32>
    %63 = arith.cmpi eq, %61, %62 : vector<48x1xi32>
    %c1_i32_19 = arith.constant 1 : i32
    %64 = tpu.dynamic_rotate %44 by %c1_i32_19 dim 0 : vector<48x4xf32>, i32 -> vector<48x4xf32>
    %cst = arith.constant 0.000000e+00 : f32
    %65 = vector.shape_cast %63 : vector<48x1xi1> to vector<48x1xi1>
    %66 = vector.broadcast %65 : vector<48x1xi1> to vector<48x4xi1>
    %67 = vector.broadcast %cst : f32 to vector<48x4xf32>
    %68 = arith.select %66, %67, %64 : vector<48x4xi1>, vector<48x4xf32>
    %c7_i32 = arith.constant 7 : i32
    %69 = vector.broadcast %c7_i32 : i32 to vector<48x1xi32>
    %70 = arith.cmpi eq, %61, %69 : vector<48x1xi32>
    %c47_i32 = arith.constant 47 : i32
    %71 = tpu.dynamic_rotate %44 by %c47_i32 dim 0 : vector<48x4xf32>, i32 -> vector<48x4xf32>
    %cst_20 = arith.constant 0.000000e+00 : f32
    %72 = vector.shape_cast %70 : vector<48x1xi1> to vector<48x1xi1>
    %73 = vector.broadcast %72 : vector<48x1xi1> to vector<48x4xi1>
    %74 = vector.broadcast %cst_20 : f32 to vector<48x4xf32>
    %75 = arith.select %73, %74, %71 : vector<48x4xi1>, vector<48x4xf32>
    %76 = arith.truncf %68 : vector<48x4xf32> to vector<48x4xbf16>
    %77 = arith.truncf %44 : vector<48x4xf32> to vector<48x4xbf16>
    %78 = arith.truncf %75 : vector<48x4xf32> to vector<48x4xbf16>
    %79 = tpu.concatenate %76, %77, %78 in 1 : vector<48x4xbf16>, vector<48x4xbf16>, vector<48x4xbf16> -> vector<48x12xbf16>
    %cst_21 = arith.constant 0.000000e+00 : f32
    %80 = vector.broadcast %cst_21 : f32 to vector<32x8xf32>
    %81 = vector.extract_strided_slice %79 {offsets = [0, 0], sizes = [32, 12], strides = [1, 1]} : vector<48x12xbf16> to vector<32x12xbf16>
    %c0_22 = arith.constant 0 : index
    %c0_23 = arith.constant 0 : index
    %c0_24 = arith.constant 0 : index
    %82 = vector.load %arg5[%c0_22, %c0_23, %c0_24] : memref<3x12x8xbf16, #tpu.memory_space<vmem>>, vector<1x12x8xbf16>
    %83 = vector.shape_cast %82 : vector<1x12x8xbf16> to vector<12x8xbf16>
    %cst_25 = arith.constant dense<0.000000e+00> : vector<32x8xf32>
    %84 = tpu.matmul %81, %83, %cst_25 {dimension_numbers = #tpu.dot_dimension_numbers<[1], [0], [0], [1], [0, 0, 1, 1], [], []>} : vector<32x12xbf16>, vector<12x8xbf16>, vector<32x8xf32> -> vector<32x8xf32>
    %85 = arith.addf %80, %84 : vector<32x8xf32>
    %86 = vector.extract_strided_slice %79 {offsets = [8, 0], sizes = [32, 12], strides = [1, 1]} : vector<48x12xbf16> to vector<32x12xbf16>
    %c1 = arith.constant 1 : index
    %c0_26 = arith.constant 0 : index
    %c0_27 = arith.constant 0 : index
    %87 = vector.load %arg5[%c1, %c0_26, %c0_27] : memref<3x12x8xbf16, #tpu.memory_space<vmem>>, vector<1x12x8xbf16>
    %88 = vector.shape_cast %87 : vector<1x12x8xbf16> to vector<12x8xbf16>
    %cst_28 = arith.constant dense<0.000000e+00> : vector<32x8xf32>
    %89 = tpu.matmul %86, %88, %cst_28 {dimension_numbers = #tpu.dot_dimension_numbers<[1], [0], [0], [1], [0, 0, 1, 1], [], []>} : vector<32x12xbf16>, vector<12x8xbf16>, vector<32x8xf32> -> vector<32x8xf32>
    %90 = arith.addf %85, %89 : vector<32x8xf32>
    %91 = vector.extract_strided_slice %79 {offsets = [16, 0], sizes = [32, 12], strides = [1, 1]} : vector<48x12xbf16> to vector<32x12xbf16>
    %c2 = arith.constant 2 : index
    %c0_29 = arith.constant 0 : index
    %c0_30 = arith.constant 0 : index
    %92 = vector.load %arg5[%c2, %c0_29, %c0_30] : memref<3x12x8xbf16, #tpu.memory_space<vmem>>, vector<1x12x8xbf16>
    %93 = vector.shape_cast %92 : vector<1x12x8xbf16> to vector<12x8xbf16>
    %cst_31 = arith.constant dense<0.000000e+00> : vector<32x8xf32>
    %94 = tpu.matmul %91, %93, %cst_31 {dimension_numbers = #tpu.dot_dimension_numbers<[1], [0], [0], [1], [0, 0, 1, 1], [], []>} : vector<32x12xbf16>, vector<12x8xbf16>, vector<32x8xf32> -> vector<32x8xf32>
    %95 = arith.addf %90, %94 : vector<32x8xf32>
    %c0_32 = arith.constant 0 : index
    %c0_33 = arith.constant 0 : index
    %96 = vector.load %arg6[%c0_32, %c0_33] : memref<1x8xf32, #tpu.memory_space<vmem>>, vector<1x8xf32>
    %97 = vector.broadcast %96 : vector<1x8xf32> to vector<32x8xf32>
    %98 = arith.addf %95, %97 : vector<32x8xf32>
    %cst_34 = arith.constant 0.000000e+00 : f32
    %99 = vector.broadcast %cst_34 : f32 to vector<32x8xf32>
    %100 = arith.maximumf %98, %99 : vector<32x8xf32>
    %101 = tpu.iota {dimensions = array<i32: 0>} : vector<32x1xi32>
    %c0_i32_35 = arith.constant 0 : i32
    %102 = arith.cmpi eq, %arg1, %c0_i32_35 : i32
    %c8_i32_36 = arith.constant 8 : i32
    %103 = vector.broadcast %c8_i32_36 : i32 to vector<32x1xi32>
    %104 = arith.cmpi slt, %101, %103 : vector<32x1xi32>
    %105 = vector.broadcast %102 : i1 to vector<32x1xi1>
    %106 = arith.andi %105, %104 : vector<32x1xi1>
    %c3_i32_37 = arith.constant 3 : i32
    %107 = arith.cmpi eq, %arg1, %c3_i32_37 : i32
    %c24_i32 = arith.constant 24 : i32
    %108 = vector.broadcast %c24_i32 : i32 to vector<32x1xi32>
    %109 = arith.cmpi sge, %101, %108 : vector<32x1xi32>
    %110 = vector.broadcast %107 : i1 to vector<32x1xi1>
    %111 = arith.andi %110, %109 : vector<32x1xi1>
    %112 = arith.ori %106, %111 : vector<32x1xi1>
    %cst_38 = arith.constant 0.000000e+00 : f32
    %113 = vector.shape_cast %112 : vector<32x1xi1> to vector<32x1xi1>
    %114 = vector.broadcast %113 : vector<32x1xi1> to vector<32x8xi1>
    %115 = vector.broadcast %cst_38 : f32 to vector<32x8xf32>
    %116 = arith.select %114, %115, %100 : vector<32x8xi1>, vector<32x8xf32>
    %117 = tpu.iota {dimensions = array<i32: 0>} : vector<32x1xi32>
    %c8_i32_39 = arith.constant 8 : i32
    %c0_i32_40 = arith.constant 0 : i32
    %118 = arith.cmpi eq, %c8_i32_39, %c0_i32_40 : i32
    %c1_i32_41 = arith.constant 1 : i32
    %119 = arith.select %118, %c1_i32_41, %c8_i32_39 : i32
    %120 = vector.broadcast %119 : i32 to vector<32x1xi32>
    %121 = arith.remsi %117, %120 : vector<32x1xi32>
    %c0_i32_42 = arith.constant 0 : i32
    %122 = vector.broadcast %c0_i32_42 : i32 to vector<32x1xi32>
    %123 = arith.cmpi ne, %121, %122 : vector<32x1xi32>
    %c0_i32_43 = arith.constant 0 : i32
    %124 = vector.broadcast %c0_i32_43 : i32 to vector<32x1xi32>
    %125 = arith.cmpi slt, %121, %124 : vector<32x1xi32>
    %c0_i32_44 = arith.constant 0 : i32
    %126 = arith.cmpi slt, %119, %c0_i32_44 : i32
    %127 = vector.broadcast %126 : i1 to vector<32x1xi1>
    %128 = vector.broadcast %127 : vector<32x1xi1> to vector<32x1xi1>
    %129 = arith.xori %125, %128 : vector<32x1xi1>
    %130 = arith.andi %129, %123 : vector<32x1xi1>
    %131 = vector.broadcast %119 : i32 to vector<32x1xi32>
    %132 = arith.addi %121, %131 : vector<32x1xi32>
    %133 = arith.select %130, %132, %121 : vector<32x1xi1>, vector<32x1xi32>
    %c0_i32_45 = arith.constant 0 : i32
    %134 = vector.broadcast %c0_i32_45 : i32 to vector<32x1xi32>
    %135 = arith.cmpi eq, %133, %134 : vector<32x1xi32>
    %c1_i32_46 = arith.constant 1 : i32
    %136 = tpu.dynamic_rotate %116 by %c1_i32_46 dim 0 : vector<32x8xf32>, i32 -> vector<32x8xf32>
    %cst_47 = arith.constant 0.000000e+00 : f32
    %137 = vector.shape_cast %135 : vector<32x1xi1> to vector<32x1xi1>
    %138 = vector.broadcast %137 : vector<32x1xi1> to vector<32x8xi1>
    %139 = vector.broadcast %cst_47 : f32 to vector<32x8xf32>
    %140 = arith.select %138, %139, %136 : vector<32x8xi1>, vector<32x8xf32>
    %c7_i32_48 = arith.constant 7 : i32
    %141 = vector.broadcast %c7_i32_48 : i32 to vector<32x1xi32>
    %142 = arith.cmpi eq, %133, %141 : vector<32x1xi32>
    %c31_i32 = arith.constant 31 : i32
    %143 = tpu.dynamic_rotate %116 by %c31_i32 dim 0 : vector<32x8xf32>, i32 -> vector<32x8xf32>
    %cst_49 = arith.constant 0.000000e+00 : f32
    %144 = vector.shape_cast %142 : vector<32x1xi1> to vector<32x1xi1>
    %145 = vector.broadcast %144 : vector<32x1xi1> to vector<32x8xi1>
    %146 = vector.broadcast %cst_49 : f32 to vector<32x8xf32>
    %147 = arith.select %145, %146, %143 : vector<32x8xi1>, vector<32x8xf32>
    %148 = arith.truncf %140 : vector<32x8xf32> to vector<32x8xbf16>
    %149 = arith.truncf %116 : vector<32x8xf32> to vector<32x8xbf16>
    %150 = arith.truncf %147 : vector<32x8xf32> to vector<32x8xbf16>
    %151 = tpu.concatenate %148, %149, %150 in 1 : vector<32x8xbf16>, vector<32x8xbf16>, vector<32x8xbf16> -> vector<32x24xbf16>
    %cst_50 = arith.constant 0.000000e+00 : f32
    %152 = vector.broadcast %cst_50 : f32 to vector<16x8xf32>
    %153 = vector.extract_strided_slice %151 {offsets = [0, 0], sizes = [16, 24], strides = [1, 1]} : vector<32x24xbf16> to vector<16x24xbf16>
    %c0_51 = arith.constant 0 : index
    %c0_52 = arith.constant 0 : index
    %c0_53 = arith.constant 0 : index
    %154 = vector.load %arg7[%c0_51, %c0_52, %c0_53] : memref<3x24x8xbf16, #tpu.memory_space<vmem>>, vector<1x24x8xbf16>
    %155 = vector.shape_cast %154 : vector<1x24x8xbf16> to vector<24x8xbf16>
    %cst_54 = arith.constant dense<0.000000e+00> : vector<16x8xf32>
    %156 = tpu.matmul %153, %155, %cst_54 {dimension_numbers = #tpu.dot_dimension_numbers<[1], [0], [0], [1], [0, 0, 1, 1], [], []>} : vector<16x24xbf16>, vector<24x8xbf16>, vector<16x8xf32> -> vector<16x8xf32>
    %157 = arith.addf %152, %156 : vector<16x8xf32>
    %158 = vector.extract_strided_slice %151 {offsets = [8, 0], sizes = [16, 24], strides = [1, 1]} : vector<32x24xbf16> to vector<16x24xbf16>
    %c1_55 = arith.constant 1 : index
    %c0_56 = arith.constant 0 : index
    %c0_57 = arith.constant 0 : index
    %159 = vector.load %arg7[%c1_55, %c0_56, %c0_57] : memref<3x24x8xbf16, #tpu.memory_space<vmem>>, vector<1x24x8xbf16>
    %160 = vector.shape_cast %159 : vector<1x24x8xbf16> to vector<24x8xbf16>
    %cst_58 = arith.constant dense<0.000000e+00> : vector<16x8xf32>
    %161 = tpu.matmul %158, %160, %cst_58 {dimension_numbers = #tpu.dot_dimension_numbers<[1], [0], [0], [1], [0, 0, 1, 1], [], []>} : vector<16x24xbf16>, vector<24x8xbf16>, vector<16x8xf32> -> vector<16x8xf32>
    %162 = arith.addf %157, %161 : vector<16x8xf32>
    %163 = vector.extract_strided_slice %151 {offsets = [16, 0], sizes = [16, 24], strides = [1, 1]} : vector<32x24xbf16> to vector<16x24xbf16>
    %c2_59 = arith.constant 2 : index
    %c0_60 = arith.constant 0 : index
    %c0_61 = arith.constant 0 : index
    %164 = vector.load %arg7[%c2_59, %c0_60, %c0_61] : memref<3x24x8xbf16, #tpu.memory_space<vmem>>, vector<1x24x8xbf16>
    %165 = vector.shape_cast %164 : vector<1x24x8xbf16> to vector<24x8xbf16>
    %cst_62 = arith.constant dense<0.000000e+00> : vector<16x8xf32>
    %166 = tpu.matmul %163, %165, %cst_62 {dimension_numbers = #tpu.dot_dimension_numbers<[1], [0], [0], [1], [0, 0, 1, 1], [], []>} : vector<16x24xbf16>, vector<24x8xbf16>, vector<16x8xf32> -> vector<16x8xf32>
    %167 = arith.addf %162, %166 : vector<16x8xf32>
    %c0_63 = arith.constant 0 : index
    %c0_64 = arith.constant 0 : index
    %168 = vector.load %arg8[%c0_63, %c0_64] : memref<1x8xf32, #tpu.memory_space<vmem>>, vector<1x8xf32>
    %169 = vector.broadcast %168 : vector<1x8xf32> to vector<16x8xf32>
    %170 = arith.addf %167, %169 : vector<16x8xf32>
    %cst_65 = arith.constant 0.000000e+00 : f32
    %171 = vector.broadcast %cst_65 : f32 to vector<16x8xf32>
    %172 = arith.maximumf %170, %171 : vector<16x8xf32>
    %173 = vector.shape_cast %172 : vector<16x8xf32> to vector<2x8x8xf32>
    %c0_66 = arith.constant 0 : index
    %c0_67 = arith.constant 0 : index
    %c0_68 = arith.constant 0 : index
    %c0_69 = arith.constant 0 : index
    %174 = vector.load %arg9[%c0_66, %c0_67, %c0_68, %c0_69] : memref<1x2x8x8xf32, #tpu.memory_space<vmem>>, vector<1x2x8x8xf32>
    %175 = vector.shape_cast %174 : vector<1x2x8x8xf32> to vector<2x8x8xf32>
    %176 = vector.shape_cast %173 : vector<2x8x8xf32> to vector<1x2x8x8xf32>
    tpu.vector_store %arg9[%c0_66, %c0_67, %c0_68, %c0_69], %176 {strides = array<i32>} : memref<1x2x8x8xf32, #tpu.memory_space<vmem>>, vector<1x2x8x8xf32>,
    return
  }
  func.func @transform_0(%arg0: i32, %arg1: i32) -> (i32, i32, i32, i32, i32) {
    %c0_i32 = arith.constant 0 : i32
    %c0_i32_0 = arith.constant 0 : i32
    %c0_i32_1 = arith.constant 0 : i32
    %c0_i32_2 = arith.constant 0 : i32
    return %arg0, %arg1, %c0_i32, %c0_i32_0, %c0_i32_1 : i32, i32, i32, i32, i32
  }
  func.func @transform_1(%arg0: i32, %arg1: i32) -> (i32, i32, i32, i32, i32) {
    %c1_i32 = arith.constant 1 : i32
    %0 = arith.muli %arg1, %c1_i32 : i32
    %c1_i32_0 = arith.constant 1 : i32
    %1 = arith.subi %0, %c1_i32_0 : i32
    %c0_i32 = arith.constant 0 : i32
    %2 = arith.maxsi %1, %c0_i32 : i32
    %c0_i32_1 = arith.constant 0 : i32
    %c0_i32_2 = arith.constant 0 : i32
    %c0_i32_3 = arith.constant 0 : i32
    %c0_i32_4 = arith.constant 0 : i32
    return %arg0, %2, %c0_i32_1, %c0_i32_2, %c0_i32_3 : i32, i32, i32, i32, i32
  }
  func.func @transform_2(%arg0: i32, %arg1: i32) -> (i32, i32, i32, i32, i32) {
    %c1_i32 = arith.constant 1 : i32
    %0 = arith.addi %arg1, %c1_i32 : i32
    %c1_i32_0 = arith.constant 1 : i32
    %1 = arith.muli %0, %c1_i32_0 : i32
    %c3_i32 = arith.constant 3 : i32
    %2 = arith.minsi %1, %c3_i32 : i32
    %c0_i32 = arith.constant 0 : i32
    %3 = arith.maxsi %2, %c0_i32 : i32
    %c0_i32_1 = arith.constant 0 : i32
    %c0_i32_2 = arith.constant 0 : i32
    %c0_i32_3 = arith.constant 0 : i32
    %c0_i32_4 = arith.constant 0 : i32
    return %arg0, %3, %c0_i32_1, %c0_i32_2, %c0_i32_3 : i32, i32, i32, i32, i32
  }
  func.func @transform_3(%arg0: i32, %arg1: i32) -> (i32, i32, i32) {
    %c0_i32 = arith.constant 0 : i32
    %c0_i32_0 = arith.constant 0 : i32
    %c0_i32_1 = arith.constant 0 : i32
    %c0_i32_2 = arith.constant 0 : i32
    return %c0_i32, %c0_i32_0, %c0_i32_1 : i32, i32, i32
  }
  func.func @transform_4(%arg0: i32, %arg1: i32) -> (i32, i32) {
    %c0_i32 = arith.constant 0 : i32
    %c0_i32_0 = arith.constant 0 : i32
    %c0_i32_1 = arith.constant 0 : i32
    return %c0_i32, %c0_i32_0 : i32, i32
  }
  func.func @transform_5(%arg0: i32, %arg1: i32) -> (i32, i32, i32) {
    %c0_i32 = arith.constant 0 : i32
    %c0_i32_0 = arith.constant 0 : i32
    %c0_i32_1 = arith.constant 0 : i32
    %c0_i32_2 = arith.constant 0 : i32
    return %c0_i32, %c0_i32_0, %c0_i32_1 : i32, i32, i32
  }
  func.func @transform_6(%arg0: i32, %arg1: i32) -> (i32, i32) {
    %c0_i32 = arith.constant 0 : i32
    %c0_i32_0 = arith.constant 0 : i32
    %c0_i32_1 = arith.constant 0 : i32
    return %c0_i32, %c0_i32_0 : i32, i32
  }
  func.func @transform_7(%arg0: i32, %arg1: i32) -> (i32, i32, i32, i32) {
    %c0_i32 = arith.constant 0 : i32
    %c0_i32_0 = arith.constant 0 : i32
    %c0_i32_1 = arith.constant 0 : i32
    return %arg0, %arg1, %c0_i32, %c0_i32_0 : i32, i32, i32, i32
  }
}

</mosaic_0001>

<llo_original>
// kernel: down_forward.1
$region0: #{down_forward.1}
  #allocation0 [shape = 'u32[]', space=smem, size = 0x4, offset = 0x4, fixed_abs, tag = 'smem constant byte address 0x4 - core index']
  #allocation1 [shape = 'u32[144,128]{1,0:T(1,128)}', space=vmem, size = 0x12000, scoped, tag = 'internal scratch']
  %s0 = inlined_call_operand.vmem [shape: bf16[2,8,2,8,8], index: 0, kind: input, shape index: {}, may-alias: {0,1,2}]
  %s1 = inlined_call_operand.vmem [shape: bf16[2,8,2,8,8], index: 1, kind: input, shape index: {}, may-alias: {0,1,2}]
  %s2 = inlined_call_operand.vmem [shape: bf16[2,8,2,8,8], index: 2, kind: input, shape index: {}, may-alias: {0,1,2}]
  %s3 = inlined_call_operand.vmem [shape: bf16[3,12,8], index: 3, kind: input, shape index: {}]
  %s4 = inlined_call_operand.vmem [shape: f32[1,8], index: 4, kind: input, shape index: {}]
  %s5 = inlined_call_operand.vmem [shape: bf16[3,24,8], index: 5, kind: input, shape index: {}]
  %s6 = inlined_call_operand.vmem [shape: f32[1,8], index: 6, kind: input, shape index: {}]
  %s7 = inlined_call_operand.vmem [shape: f32[2,8,8,8], index: 7, kind: output, shape index: {}]
  %s8 = sld [smem:[#allocation0]]
  $region61: #{down_forward.1} parent=0
    _
  %s10 = ssub.s32 1, %s8
  %s11 = scalar_select 0, %s10, %s8
  loop: start=0, step=1, limit=10
  $region2: #{down_forward.1} parent=0 // loop_pre_header
    _
  $region3: #{down_forward.1} parent=0 // loop_header
    %s13 = sphi 0, %s17
    %p14 = scmp.ge.s32.totalorder %s13, 10
    %s20 = sphi 0, %s32
    %s21 = sphi 0, %s28
    %s22 = sphi 0, %s20
    %s23 = sphi 0, %s21
    %s24 = sphi 0, %s22
    %s25 = sphi 0, %s23
    %s37 = sphi 0, %s39
    %s40 = sphi 0, %s37
    %s41 = sphi 0, %s40
    %s57 = sphi 0, %s41
    %s71 = sphi 0, %s73
    %s74 = sphi 0, %s71
    %s75 = sphi 0, %s74
    %s91 = sphi 0, %s75
    %s109 = sphi 0, %s111
    %s112 = sphi 0, %s109
    %s113 = sphi 0, %s112
    %s129 = sphi 0, %s113
    %s133 = sphi 0, %s133
    %s135 = sphi 0, %s133
    %s136 = sphi 0, %s135
    %s150 = sphi 0, %s136
    %s154 = sphi 0, %s154
    %s156 = sphi 0, %s154
    %s157 = sphi 0, %s156
    %s171 = sphi 0, %s157
    %s175 = sphi 0, %s175
    %s177 = sphi 0, %s175
    %s178 = sphi 0, %s177
    %s192 = sphi 0, %s178
    %s196 = sphi 0, %s196
    %s198 = sphi 0, %s196
    %s199 = sphi 0, %s198
    %s213 = sphi 0, %s199
    %s221 = sphi 0, %s223
    %s224 = sphi 0, %s221
    %s225 = sphi 0, %s224
    %s241 = sphi 0, %s225
  $region4: #{down_forward.1} parent=0 // loop_header_branch
    %16 = sbr.rel (%p14) target = $region8
  $region5: #{down_forward.1} parent=0 // loop_body
    %s18 = ssub.s32 %s13, 1
    %s19 = ssub.s32 %s13, 2
    %s26 = sadd.s32 1, %s21
    %p27 = scmp.ge.s32.totalorder %s26, 4
    %s28 = scalar_select %p27, 0, %s26
    %s29 = sadd.s32 1, %s20
    %s30 = scalar_select %p27, %s29, %s20
    %p31 = scmp.ge.s32.totalorder %s30, 2
    %s32 = scalar_select %p31, 0, %s30
    %s33 = ssub.s32 %s20, %s32
    %s34 = ssub.s32 %s21, %s28
    %s35 = sor.u32 %s33, %s34
    %p36 = scmp.eq.s32.totalorder %s35, 0
    %s38 = sadd.s32 %s37, 1
    %s39 = scalar_select %p36, %s37, %s38
    %p42 = pneg %p36
    %p43 = scmp.eq.s32.totalorder %s13, 7
    %p44 = por %p42, %p43
    %p45 = scmp.ne.s32.totalorder %s37, %s40
    %p46 = scmp.eq.s32.totalorder %s13, 0
    %p47 = por %p45, %p46
    %p48 = scmp.ne.s32.totalorder %s37, %s40
    %p49 = scmp.eq.s32.totalorder %s18, 7
    %p50 = por %p48, %p49
    %p51 = scmp.ne.s32.totalorder %s40, %s41
    %p52 = scmp.eq.s32.totalorder %s18, 0
    %p53 = por %p51, %p52
    %p54 = scmp.ne.s32.totalorder %s40, %s41
    %p55 = scmp.eq.s32.totalorder %s19, 7
    %p56 = por %p54, %p55
    %p58 = scmp.ne.s32.totalorder %s41, %s57
    %p59 = scmp.eq.s32.totalorder %s19, 0
    %p60 = por %p58, %p59
    %s61 = ssub.s32 %s21, 1
    %p62 = scmp.gt.s32.totalorder %s61, 0
    %s63 = scalar_select %p62, %s61, 0
    %s64 = ssub.s32 %s28, 1
    %p65 = scmp.gt.s32.totalorder %s64, 0
    %s66 = scalar_select %p65, %s64, 0
    %s67 = ssub.s32 %s20, %s32
    %s68 = ssub.s32 %s63, %s66
    %s69 = sor.u32 %s67, %s68
    %p70 = scmp.eq.s32.totalorder %s69, 0
    %s72 = sadd.s32 %s71, 1
    %s73 = scalar_select %p70, %s71, %s72
    %p76 = pneg %p70
    %p77 = scmp.eq.s32.totalorder %s13, 7
    %p78 = por %p76, %p77
    %p79 = scmp.ne.s32.totalorder %s71, %s74
    %p80 = scmp.eq.s32.totalorder %s13, 0
    %p81 = por %p79, %p80
    %p82 = scmp.ne.s32.totalorder %s71, %s74
    %p83 = scmp.eq.s32.totalorder %s18, 7
    %p84 = por %p82, %p83
    %p85 = scmp.ne.s32.totalorder %s74, %s75
    %p86 = scmp.eq.s32.totalorder %s18, 0
    %p87 = por %p85, %p86
    %p88 = scmp.ne.s32.totalorder %s74, %s75
    %p89 = scmp.eq.s32.totalorder %s19, 7
    %p90 = por %p88, %p89
    %p92 = scmp.ne.s32.totalorder %s75, %s91
    %p93 = scmp.eq.s32.totalorder %s19, 0
    %p94 = por %p92, %p93
    %s95 = sadd.s32 %s21, 1
    %p96 = scmp.lt.s32.totalorder %s95, 3
    %s97 = scalar_select %p96, %s95, 3
    %p98 = scmp.gt.s32.totalorder %s97, 0
    %s99 = scalar_select %p98, %s97, 0
    %s100 = sadd.s32 %s28, 1
    %p101 = scmp.lt.s32.totalorder %s100, 3
    %s102 = scalar_select %p101, %s100, 3
    %p103 = scmp.gt.s32.totalorder %s102, 0
    %s104 = scalar_select %p103, %s102, 0
    %s105 = ssub.s32 %s20, %s32
    %s106 = ssub.s32 %s99, %s104
    %s107 = sor.u32 %s105, %s106
    %p108 = scmp.eq.s32.totalorder %s107, 0
    %s110 = sadd.s32 %s109, 1
    %s111 = scalar_select %p108, %s109, %s110
    %p114 = pneg %p108
    %p115 = scmp.eq.s32.totalorder %s13, 7
    %p116 = por %p114, %p115
    %p117 = scmp.ne.s32.totalorder %s109, %s112
    %p118 = scmp.eq.s32.totalorder %s13, 0
    %p119 = por %p117, %p118
    %p120 = scmp.ne.s32.totalorder %s109, %s112
    %p121 = scmp.eq.s32.totalorder %s18, 7
    %p122 = por %p120, %p121
    %p123 = scmp.ne.s32.totalorder %s112, %s113
    %p124 = scmp.eq.s32.totalorder %s18, 0
    %p125 = por %p123, %p124
    %p126 = scmp.ne.s32.totalorder %s112, %s113
    %p127 = scmp.eq.s32.totalorder %s19, 7
    %p128 = por %p126, %p127
    %p130 = scmp.ne.s32.totalorder %s113, %s129
    %p131 = scmp.eq.s32.totalorder %s19, 0
    %p132 = por %p130, %p131
    %s134 = sadd.s32 %s133, 1
    %p137 = scmp.eq.s32.totalorder %s13, 7
    %p138 = scmp.ne.s32.totalorder %s133, %s135
    %p139 = scmp.eq.s32.totalorder %s13, 0
    %p140 = por %p138, %p139
    %p141 = scmp.ne.s32.totalorder %s133, %s135
    %p142 = scmp.eq.s32.totalorder %s18, 7
    %p143 = por %p141, %p142
    %p144 = scmp.ne.s32.totalorder %s135, %s136
    %p145 = scmp.eq.s32.totalorder %s18, 0
    %p146 = por %p144, %p145
    %p147 = scmp.ne.s32.totalorder %s135, %s136
    %p148 = scmp.eq.s32.totalorder %s19, 7
    %p149 = por %p147, %p148
    %p151 = scmp.ne.s32.totalorder %s136, %s150
    %p152 = scmp.eq.s32.totalorder %s19, 0
    %p153 = por %p151, %p152
    %s155 = sadd.s32 %s154, 1
    %p158 = scmp.eq.s32.totalorder %s13, 7
    %p159 = scmp.ne.s32.totalorder %s154, %s156
    %p160 = scmp.eq.s32.totalorder %s13, 0
    %p161 = por %p159, %p160
    %p162 = scmp.ne.s32.totalorder %s154, %s156
    %p163 = scmp.eq.s32.totalorder %s18, 7
    %p164 = por %p162, %p163
    %p165 = scmp.ne.s32.totalorder %s156, %s157
    %p166 = scmp.eq.s32.totalorder %s18, 0
    %p167 = por %p165, %p166
    %p168 = scmp.ne.s32.totalorder %s156, %s157
    %p169 = scmp.eq.s32.totalorder %s19, 7
    %p170 = por %p168, %p169
    %p172 = scmp.ne.s32.totalorder %s157, %s171
    %p173 = scmp.eq.s32.totalorder %s19, 0
    %p174 = por %p172, %p173
    %s176 = sadd.s32 %s175, 1
    %p179 = scmp.eq.s32.totalorder %s13, 7
    %p180 = scmp.ne.s32.totalorder %s175, %s177
    %p181 = scmp.eq.s32.totalorder %s13, 0
    %p182 = por %p180, %p181
    %p183 = scmp.ne.s32.totalorder %s175, %s177
    %p184 = scmp.eq.s32.totalorder %s18, 7
    %p185 = por %p183, %p184
    %p186 = scmp.ne.s32.totalorder %s177, %s178
    %p187 = scmp.eq.s32.totalorder %s18, 0
    %p188 = por %p186, %p187
    %p189 = scmp.ne.s32.totalorder %s177, %s178
    %p190 = scmp.eq.s32.totalorder %s19, 7
    %p191 = por %p189, %p190
    %p193 = scmp.ne.s32.totalorder %s178, %s192
    %p194 = scmp.eq.s32.totalorder %s19, 0
    %p195 = por %p193, %p194
    %s197 = sadd.s32 %s196, 1
    %p200 = scmp.eq.s32.totalorder %s13, 7
    %p201 = scmp.ne.s32.totalorder %s196, %s198
    %p202 = scmp.eq.s32.totalorder %s13, 0
    %p203 = por %p201, %p202
    %p204 = scmp.ne.s32.totalorder %s196, %s198
    %p205 = scmp.eq.s32.totalorder %s18, 7
    %p206 = por %p204, %p205
    %p207 = scmp.ne.s32.totalorder %s198, %s199
    %p208 = scmp.eq.s32.totalorder %s18, 0
    %p209 = por %p207, %p208
    %p210 = scmp.ne.s32.totalorder %s198, %s199
    %p211 = scmp.eq.s32.totalorder %s19, 7
    %p212 = por %p210, %p211
    %p214 = scmp.ne.s32.totalorder %s199, %s213
    %p215 = scmp.eq.s32.totalorder %s19, 0
    %p216 = por %p214, %p215
    %s217 = ssub.s32 %s20, %s32
    %s218 = ssub.s32 %s21, %s28
    %s219 = sor.u32 %s217, %s218
    %p220 = scmp.eq.s32.totalorder %s219, 0
    %s222 = sadd.s32 %s221, 1
    %s223 = scalar_select %p220, %s221, %s222
    %p226 = pneg %p220
    %p227 = scmp.eq.s32.totalorder %s13, 7
    %p228 = por %p226, %p227
    %p229 = scmp.ne.s32.totalorder %s221, %s224
    %p230 = scmp.eq.s32.totalorder %s13, 0
    %p231 = por %p229, %p230
    %p232 = scmp.ne.s32.totalorder %s221, %s224
    %p233 = scmp.eq.s32.totalorder %s18, 7
    %p234 = por %p232, %p233
    %p235 = scmp.ne.s32.totalorder %s224, %s225
    %p236 = scmp.eq.s32.totalorder %s18, 0
    %p237 = por %p235, %p236
    %p238 = scmp.ne.s32.totalorder %s224, %s225
    %p239 = scmp.eq.s32.totalorder %s19, 7
    %p240 = por %p238, %p239
    %p242 = scmp.ne.s32.totalorder %s225, %s241
    %p243 = scmp.eq.s32.totalorder %s19, 0
    %p244 = por %p242, %p243
    %p245 = scmp.le.s32.totalorder 1, %s13
    %p246 = scmp.lt.s32.totalorder %s13, 9
    %p247 = pnand %p245, %p246
    %p248 = pneg %p247
    // Predicated region
    $region9: #{down_forward.1} parent=5 // pred_check
      _
    $region10: #{down_forward.1} parent=5 // pred_check_branch
      %250 = sbr.rel (%p247) target = $region12
    $region11: #{down_forward.1} parent=5 // pred_region
      %s251 = ssub.s32 %s13, 1
      // Predicated region
      $region13: #{down_forward.1} parent=11 // pred_check
        %p252 = pneg %p146
      $region14: #{down_forward.1} parent=11 // pred_check_branch
        %254 = sbr.rel (%p252) target = $region16
      $region15: #{down_forward.1} parent=11 // pred_region
        _
      $region16: #{down_forward.1} parent=11 // pred_fallthru
        _
      // Predicated region
      $region17: #{down_forward.1} parent=11 // pred_check
        %p255 = pneg %p167
      $region18: #{down_forward.1} parent=11 // pred_check_branch
        %257 = sbr.rel (%p255) target = $region20
      $region19: #{down_forward.1} parent=11 // pred_region
        _
      $region20: #{down_forward.1} parent=11 // pred_fallthru
        _
      // Predicated region
      $region21: #{down_forward.1} parent=11 // pred_check
        %p258 = pneg %p188
      $region22: #{down_forward.1} parent=11 // pred_check_branch
        %260 = sbr.rel (%p258) target = $region24
      $region23: #{down_forward.1} parent=11 // pred_region
        _
      $region24: #{down_forward.1} parent=11 // pred_fallthru
        _
      // Predicated region
      $region25: #{down_forward.1} parent=11 // pred_check
        %p261 = pneg %p209
      $region26: #{down_forward.1} parent=11 // pred_check_branch
        %263 = sbr.rel (%p261) target = $region28
      $region27: #{down_forward.1} parent=11 // pred_region
        _
      $region28: #{down_forward.1} parent=11 // pred_fallthru
        _
    $region12: #{down_forward.1} parent=5 // pred_fallthru
      _
    %p264 = scmp.lt.s32.totalorder %s13, 8
    // Predicated region
    $region29: #{down_forward.1} parent=5 // pred_check
      %p265 = pneg %p264
    $region30: #{down_forward.1} parent=5 // pred_check_branch
      %267 = sbr.rel (%p265) target = $region32
    $region31: #{down_forward.1} parent=5 // pred_region
      // Predicated region
      $region33: #{down_forward.1} parent=31 // pred_check
        %p268 = pneg %p47
      $region34: #{down_forward.1} parent=31 // pred_check_branch
        %270 = sbr.rel (%p268) target = $region36
      $region35: #{down_forward.1} parent=31 // pred_region
        %s271 = smul.u32 2, %s21
        %p272 = scmp.lt.s32.totalorder %s20, 1
        %s273 = scalar_select %p272, %s20, 1
        %p274 = scmp.lt.s32.totalorder %s271, 7
        %s275 = scalar_select %p274, %s271, 7
        %s276 = smul.addr %s275, 2
        %s277 = smul.addr %s273, 16
        %s278 = sadd.s32 %s276, %s277
        %s279 = smul.addr %s278, 4
        %s280 = scalar_lea.vmem %s0, %s279
        %s281 = smul.u32 2, %s21
      $region36: #{down_forward.1} parent=31 // pred_fallthru
        _
      // Predicated region
      $region37: #{down_forward.1} parent=31 // pred_check
        %p282 = pneg %p81
      $region38: #{down_forward.1} parent=31 // pred_check_branch
        %284 = sbr.rel (%p282) target = $region40
      $region39: #{down_forward.1} parent=31 // pred_region
        %s285 = ssub.s32 %s21, 1
        %p286 = scmp.gt.s32.totalorder %s285, 0
        %s287 = scalar_select %p286, %s285, 0
        %s288 = smul.u32 2, %s287
        %p289 = scmp.lt.s32.totalorder %s20, 1
        %s290 = scalar_select %p289, %s20, 1
        %p291 = scmp.lt.s32.totalorder %s288, 7
        %s292 = scalar_select %p291, %s288, 7
        %s293 = smul.addr %s292, 2
        %s294 = smul.addr %s290, 16
        %s295 = sadd.s32 %s293, %s294
        %s296 = smul.addr %s295, 4
        %s297 = scalar_lea.vmem %s1, %s296
        %s298 = ssub.s32 %s21, 1
        %p299 = scmp.gt.s32.totalorder %s298, 0
        %s300 = scalar_select %p299, %s298, 0
        %s301 = smul.u32 2, %s300
      $region40: #{down_forward.1} parent=31 // pred_fallthru
        _
      // Predicated region
      $region41: #{down_forward.1} parent=31 // pred_check
        %p302 = pneg %p119
      $region42: #{down_forward.1} parent=31 // pred_check_branch
        %304 = sbr.rel (%p302) target = $region44
      $region43: #{down_forward.1} parent=31 // pred_region
        %s305 = sadd.s32 %s21, 1
        %p306 = scmp.lt.s32.totalorder %s305, 3
        %s307 = scalar_select %p306, %s305, 3
        %p308 = scmp.gt.s32.totalorder %s307, 0
        %s309 = scalar_select %p308, %s307, 0
        %s310 = smul.u32 2, %s309
        %p311 = scmp.lt.s32.totalorder %s20, 1
        %s312 = scalar_select %p311, %s20, 1
        %p313 = scmp.lt.s32.totalorder %s310, 7
        %s314 = scalar_select %p313, %s310, 7
        %s315 = smul.addr %s314, 2
        %s316 = smul.addr %s312, 16
        %s317 = sadd.s32 %s315, %s316
        %s318 = smul.addr %s317, 4
        %s319 = scalar_lea.vmem %s2, %s318
        %s320 = sadd.s32 %s21, 1
        %p321 = scmp.lt.s32.totalorder %s320, 3
        %s322 = scalar_select %p321, %s320, 3
        %p323 = scmp.gt.s32.totalorder %s322, 0
        %s324 = scalar_select %p323, %s322, 0
        %s325 = smul.u32 2, %s324
      $region44: #{down_forward.1} parent=31 // pred_fallthru
        _
    $region32: #{down_forward.1} parent=5 // pred_fallthru
      _
    %p326 = scmp.le.s32.totalorder 1, %s13
    %p327 = scmp.lt.s32.totalorder %s13, 9
    %p328 = pnand %p326, %p327
    %p329 = pneg %p328
    // Predicated region
    $region45: #{down_forward.1} parent=5 // pred_check
      _
    $region46: #{down_forward.1} parent=5 // pred_check_branch
      %331 = sbr.rel (%p328) target = $region48
    $region47: #{down_forward.1} parent=5 // pred_region
      %s332 = ssub.s32 %s13, 1
      %s333 = smul.u32 2, %s23
      %p334 = scmp.lt.s32.totalorder %s22, 1
      %s335 = scalar_select %p334, %s22, 1
      %p336 = scmp.lt.s32.totalorder %s333, 7
      %s337 = scalar_select %p336, %s333, 7
      %s338 = smul.addr %s337, 2
      %s339 = smul.addr %s335, 16
      %s340 = sadd.s32 %s338, %s339
      %s341 = smul.addr %s340, 4
      %s342 = scalar_lea.vmem %s0, %s341
      %p343 = pneg %p53
      %p344 = pneg %p50
      %s345 = ssub.s32 %s23, 1
      %p346 = scmp.gt.s32.totalorder %s345, 0
      %s347 = scalar_select %p346, %s345, 0
      %s348 = smul.u32 2, %s347
      %p349 = scmp.lt.s32.totalorder %s22, 1
      %s350 = scalar_select %p349, %s22, 1
      %p351 = scmp.lt.s32.totalorder %s348, 7
      %s352 = scalar_select %p351, %s348, 7
      %s353 = smul.addr %s352, 2
      %s354 = smul.addr %s350, 16
      %s355 = sadd.s32 %s353, %s354
      %s356 = smul.addr %s355, 4
      %s357 = scalar_lea.vmem %s1, %s356
      %p358 = pneg %p87
      %p359 = pneg %p84
      %s360 = sadd.s32 %s23, 1
      %p361 = scmp.lt.s32.totalorder %s360, 3
      %s362 = scalar_select %p361, %s360, 3
      %p363 = scmp.gt.s32.totalorder %s362, 0
      %s364 = scalar_select %p363, %s362, 0
      %s365 = smul.u32 2, %s364
      %p366 = scmp.lt.s32.totalorder %s22, 1
      %s367 = scalar_select %p366, %s22, 1
      %p368 = scmp.lt.s32.totalorder %s365, 7
      %s369 = scalar_select %p368, %s365, 7
      %s370 = smul.addr %s369, 2
      %s371 = smul.addr %s367, 16
      %s372 = sadd.s32 %s370, %s371
      %s373 = smul.addr %s372, 4
      %s374 = scalar_lea.vmem %s2, %s373
      %p375 = pneg %p125
      %p376 = pneg %p122
      %p377 = pneg %p146
      %p378 = pneg %p143
      %p379 = pneg %p167
      %p380 = pneg %p164
      %p381 = pneg %p188
      %p382 = pneg %p185
      %p383 = pneg %p209
      %p384 = pneg %p206
      %p385 = pneg %p237
      %p386 = pneg %p234
      %s387 = smul.u32 2, %s23
      %p388 = scmp.lt.s32.totalorder %s22, 1
      %s389 = scalar_select %p388, %s22, 1
      %p390 = scmp.lt.s32.totalorder %s387, 7
      %s391 = scalar_select %p390, %s387, 7
      %s392 = smul.addr %s389, 8
      %s393 = sadd.s32 %s391, %s392
      %s394 = smul.addr %s393, 8
      %s395 = scalar_lea.vmem %s7, %s394
      %s396 = smul.u32 2, %s23
      %p397 = scmp.lt.s32.totalorder %s22, 1
      %s398 = scalar_select %p397, %s22, 1
      %p399 = scmp.lt.s32.totalorder %s396, 7
      %s400 = scalar_select %p399, %s396, 7
      %s401 = smul.addr %s400, 2
      %s402 = smul.addr %s398, 16
      %s403 = sadd.s32 %s401, %s402
      %s404 = smul.addr %s403, 4
      %s405 = scalar_lea.vmem %s0, %s404
      %s406 = smul.u32 2, %s23
      %s407 = ssub.s32 %s23, 1
      %p408 = scmp.gt.s32.totalorder %s407, 0
      %s409 = scalar_select %p408, %s407, 0
      %s410 = smul.u32 2, %s409
      %p411 = scmp.lt.s32.totalorder %s22, 1
      %s412 = scalar_select %p411, %s22, 1
      %p413 = scmp.lt.s32.totalorder %s410, 7
      %s414 = scalar_select %p413, %s410, 7
      %s415 = smul.addr %s414, 2
      %s416 = smul.addr %s412, 16
      %s417 = sadd.s32 %s415, %s416
      %s418 = smul.addr %s417, 4
      %s419 = scalar_lea.vmem %s1, %s418
      %s420 = ssub.s32 %s23, 1
      %p421 = scmp.gt.s32.totalorder %s420, 0
      %s422 = scalar_select %p421, %s420, 0
      %s423 = smul.u32 2, %s422
      %s424 = sadd.s32 %s23, 1
      %p425 = scmp.lt.s32.totalorder %s424, 3
      %s426 = scalar_select %p425, %s424, 3
      %p427 = scmp.gt.s32.totalorder %s426, 0
      %s428 = scalar_select %p427, %s426, 0
      %s429 = smul.u32 2, %s428
      %p430 = scmp.lt.s32.totalorder %s22, 1
      %s431 = scalar_select %p430, %s22, 1
      %p432 = scmp.lt.s32.totalorder %s429, 7
      %s433 = scalar_select %p432, %s429, 7
      %s434 = smul.addr %s433, 2
      %s435 = smul.addr %s431, 16
      %s436 = sadd.s32 %s434, %s435
      %s437 = smul.addr %s436, 4
      %s438 = scalar_lea.vmem %s2, %s437
      %s439 = sadd.s32 %s23, 1
      %p440 = scmp.lt.s32.totalorder %s439, 3
      %s441 = scalar_select %p440, %s439, 3
      %p442 = scmp.gt.s32.totalorder %s441, 0
      %s443 = scalar_select %p442, %s441, 0
      %s444 = smul.u32 2, %s443
      %s445 = smul.u32 2, %s23
      %p446 = scmp.lt.s32.totalorder %s22, 1
      %s447 = scalar_select %p446, %s22, 1
      %p448 = scmp.lt.s32.totalorder %s445, 7
      %s449 = scalar_select %p448, %s445, 7
      %s450 = smul.addr %s447, 8
      %s451 = sadd.s32 %s449, %s450
      %s452 = smul.addr %s451, 8
      %s453 = scalar_lea.vmem %s7, %s452
      %s454 = smul.u32 2, %s23
      %v456 = vld [vmem:[%s405] sm:$0xf]
      %v457 = vld [vmem:[%s405 + $0x4] sm:$0xf]
      %v458 = vld [vmem:[%s405 + $0x8] sm:$0xf]
      %v459 = vld [vmem:[%s405 + $0xc] sm:$0xf]
      %v460 = vunpack.c.l.bf16 %v456
      %v461 = vunpack.c.l.bf16 %v457
      %v462 = vunpack.c.l.bf16 %v458
      %v463 = vunpack.c.l.bf16 %v459
      %v464 = vmax.f32 %v460, %v461
      %v465 = vmax.f32 %v462, %v463
      %468 = vrot.lane.b32.xlu0 %v464, 124
      %v469 = vpop.permute.xlu0 %468
      %470 = vrot.lane.b32.xlu0 %v465, 124
      %v471 = vpop.permute.xlu0 %470
      %v474 = vmax.f32 %v464, %v469
      %v475 = vmax.f32 %v465, %v471
      %v476 = vld [vmem:[%s419] sm:$0xf]
      %v477 = vld [vmem:[%s419 + $0x4] sm:$0xf]
      %v478 = vld [vmem:[%s419 + $0x8] sm:$0xf]
      %v479 = vld [vmem:[%s419 + $0xc] sm:$0xf]
      %v480 = vunpack.c.l.bf16 %v476
      %v481 = vunpack.c.l.bf16 %v477
      %v482 = vunpack.c.l.bf16 %v478
      %v483 = vunpack.c.l.bf16 %v479
      %v484 = vmax.f32 %v480, %v481
      %v485 = vmax.f32 %v482, %v483
      %488 = vrot.lane.b32.xlu0 %v484, 124
      %v489 = vpop.permute.xlu0 %488
      %490 = vrot.lane.b32.xlu0 %v485, 124
      %v491 = vpop.permute.xlu0 %490
      %v494 = vmax.f32 %v484, %v489
      %v495 = vmax.f32 %v485, %v491
      %p496 = scmp.gt.s32.totalorder %s23, 0
      %s497 = scalar_select %p496, 1, 0
      %s498 = scvt.s32.f32 %s497
      %v499 = vstv %s498
      %v500 = vmul.f32 %v494, %v499
      %v501 = vmul.f32 %v495, %v499
      %v502 = vld [vmem:[%s438] sm:$0xf]
      %v503 = vld [vmem:[%s438 + $0x4] sm:$0xf]
      %v504 = vld [vmem:[%s438 + $0x8] sm:$0xf]
      %v505 = vld [vmem:[%s438 + $0xc] sm:$0xf]
      %v506 = vunpack.c.l.bf16 %v502
      %v507 = vunpack.c.l.bf16 %v503
      %v508 = vunpack.c.l.bf16 %v504
      %v509 = vunpack.c.l.bf16 %v505
      %v510 = vmax.f32 %v506, %v507
      %v511 = vmax.f32 %v508, %v509
      %514 = vrot.lane.b32.xlu0 %v510, 124
      %v515 = vpop.permute.xlu0 %514
      %516 = vrot.lane.b32.xlu0 %v511, 124
      %v517 = vpop.permute.xlu0 %516
      %v520 = vmax.f32 %v510, %v515
      %v521 = vmax.f32 %v511, %v517
      %p522 = scmp.lt.s32.totalorder %s23, 3
      %s523 = scalar_select %p522, 1, 0
      %s524 = scvt.s32.f32 %s523
      %v525 = vstv %s524
      %v526 = vmul.f32 %v520, %v525
      %v527 = vmul.f32 %v521, %v525
      %v528 = vlaneseq
      %v529 = vshrl.u32 %v528, 7
      %v530 = vadd.s32 %v529, 8
      %v531 = vadd.s32 %v529, 16
      %v532 = vadd.s32 %v529, 24
      %v533 = vadd.s32 %v529, 32
      %v534 = vadd.s32 %v529, 40
      %vm535 = vcmp.lt.s32.totalorder %v529, 0
      %v536 = vsub.s32 0, %v529
      %v537 = vsel %vm535, %v536, %v529
      %v538 = vshrl.u32 %v537, 3
      %v539 = vand.u32 %v537, 7
      %v540 = vsub.s32 0, %v539
      %v541 = vsel %vm535, %v540, %v539
      %vm542 = vcmp.lt.s32.totalorder %v530, 0
      %v543 = vsub.s32 0, %v530
      %v544 = vsel %vm542, %v543, %v530
      %v545 = vshrl.u32 %v544, 3
      %v546 = vand.u32 %v544, 7
      %v547 = vsub.s32 0, %v546
      %v548 = vsel %vm542, %v547, %v546
      %vm549 = vcmp.lt.s32.totalorder %v531, 0
      %v550 = vsub.s32 0, %v531
      %v551 = vsel %vm549, %v550, %v531
      %v552 = vshrl.u32 %v551, 3
      %v553 = vand.u32 %v551, 7
      %v554 = vsub.s32 0, %v553
      %v555 = vsel %vm549, %v554, %v553
      %vm556 = vcmp.lt.s32.totalorder %v532, 0
      %v557 = vsub.s32 0, %v532
      %v558 = vsel %vm556, %v557, %v532
      %v559 = vshrl.u32 %v558, 3
      %v560 = vand.u32 %v558, 7
      %v561 = vsub.s32 0, %v560
      %v562 = vsel %vm556, %v561, %v560
      %vm563 = vcmp.lt.s32.totalorder %v533, 0
      %v564 = vsub.s32 0, %v533
      %v565 = vsel %vm563, %v564, %v533
      %v566 = vshrl.u32 %v565, 3
      %v567 = vand.u32 %v565, 7
      %v568 = vsub.s32 0, %v567
      %v569 = vsel %vm563, %v568, %v567
      %vm570 = vcmp.lt.s32.totalorder %v534, 0
      %v571 = vsub.s32 0, %v534
      %v572 = vsel %vm570, %v571, %v534
      %v573 = vshrl.u32 %v572, 3
      %v574 = vand.u32 %v572, 7
      %v575 = vsub.s32 0, %v574
      %v576 = vsel %vm570, %v575, %v574
      %vm577 = vcmp.ne.s32.totalorder %v541, 0
      %vm578 = vcmp.ne.s32.totalorder %v548, 0
      %vm579 = vcmp.ne.s32.totalorder %v555, 0
      %vm580 = vcmp.ne.s32.totalorder %v562, 0
      %vm581 = vcmp.ne.s32.totalorder %v569, 0
      %vm582 = vcmp.ne.s32.totalorder %v576, 0
      %vm583 = vcmp.lt.s32.totalorder %v541, 0
      %vm584 = vcmp.lt.s32.totalorder %v548, 0
      %vm585 = vcmp.lt.s32.totalorder %v555, 0
      %vm586 = vcmp.lt.s32.totalorder %v562, 0
      %vm587 = vcmp.lt.s32.totalorder %v569, 0
      %vm588 = vcmp.lt.s32.totalorder %v576, 0
      %vm589 = vmand %vm583, %vm577
      %vm590 = vmand %vm584, %vm578
      %vm591 = vmand %vm585, %vm579
      %vm592 = vmand %vm586, %vm580
      %vm593 = vmand %vm587, %vm581
      %vm594 = vmand %vm588, %vm582
      %v595 = vadd.s32 %v541, 8
      %v596 = vadd.s32 %v548, 8
      %v597 = vadd.s32 %v555, 8
      %v598 = vadd.s32 %v562, 8
      %v599 = vadd.s32 %v569, 8
      %v600 = vadd.s32 %v576, 8
      %v601 = vsel %vm589, %v595, %v541
      %v602 = vsel %vm590, %v596, %v548
      %v603 = vsel %vm591, %v597, %v555
      %v604 = vsel %vm592, %v598, %v562
      %v605 = vsel %vm593, %v599, %v569
      %v606 = vsel %vm594, %v600, %v576
      %vm607 = vcmp.eq.s32.totalorder %v601, 0
      %vm608 = vcmp.eq.s32.totalorder %v602, 0
      %vm609 = vcmp.eq.s32.totalorder %v603, 0
      %vm610 = vcmp.eq.s32.totalorder %v604, 0
      %vm611 = vcmp.eq.s32.totalorder %v605, 0
      %vm612 = vcmp.eq.s32.totalorder %v606, 0
      %v613 = vrot.slane %v500, 7
      %v614 = vrot.slane %v501, 7
      %v615 = vrot.slane %v474, 7
      %v616 = vrot.slane %v475, 7
      %v617 = vrot.slane %v526, 7
      %v618 = vrot.slane %v527, 7
      %vm619 = vcmp.lt.s32.totalorder %v529, 1
      %v620 = vsel %vm619, %v617, %v618
      %v621 = vsel %vm619, %v616, %v617
      %v622 = vsel %vm619, %v615, %v616
      %v623 = vsel %vm619, %v614, %v615
      %v624 = vsel %vm619, %v613, %v614
      %v625 = vsel %vm619, %v618, %v613
      %v626 = vsel %vm607, 1, 0
      %v627 = vsel %vm608, 1, 0
      %v628 = vsel %vm609, 1, 0
      %v629 = vsel %vm610, 1, 0
      %v630 = vsel %vm611, 1, 0
      %v631 = vsel %vm612, 1, 0
      %vm632 = vcmp.eq.s32.totalorder %v626, 1
      %vm633 = vcmp.eq.s32.totalorder %v627, 1
      %vm634 = vcmp.eq.s32.totalorder %v628, 1
      %vm635 = vcmp.eq.s32.totalorder %v629, 1
      %vm636 = vcmp.eq.s32.totalorder %v630, 1
      %vm637 = vcmp.eq.s32.totalorder %v631, 1
      %v638 = vsel %vm632, 0.0, %v625
      %v639 = vsel %vm633, 0.0, %v624
      %v640 = vsel %vm634, 0.0, %v623
      %v641 = vsel %vm635, 0.0, %v622
      %v642 = vsel %vm636, 0.0, %v621
      %v643 = vsel %vm637, 0.0, %v620
      %vm644 = vcmp.eq.s32.totalorder %v601, 7
      %vm645 = vcmp.eq.s32.totalorder %v602, 7
      %vm646 = vcmp.eq.s32.totalorder %v603, 7
      %vm647 = vcmp.eq.s32.totalorder %v604, 7
      %vm648 = vcmp.eq.s32.totalorder %v605, 7
      %vm649 = vcmp.eq.s32.totalorder %v606, 7
      %v650 = vrot.slane %v500, 1
      %v651 = vrot.slane %v501, 1
      %v652 = vrot.slane %v474, 1
      %v653 = vrot.slane %v475, 1
      %v654 = vrot.slane %v526, 1
      %v655 = vrot.slane %v527, 1
      %vm656 = vcmp.lt.s32.totalorder %v529, 7
      %v657 = vsel %vm656, %v654, %v655
      %v658 = vsel %vm656, %v653, %v654
      %v659 = vsel %vm656, %v652, %v653
      %v660 = vsel %vm656, %v651, %v652
      %v661 = vsel %vm656, %v650, %v651
      %v662 = vsel %vm656, %v655, %v650
      %v663 = vsel %vm644, 1, 0
      %v664 = vsel %vm645, 1, 0
      %v665 = vsel %vm646, 1, 0
      %v666 = vsel %vm647, 1, 0
      %v667 = vsel %vm648, 1, 0
      %v668 = vsel %vm649, 1, 0
      %vm669 = vcmp.eq.s32.totalorder %v663, 1
      %vm670 = vcmp.eq.s32.totalorder %v664, 1
      %vm671 = vcmp.eq.s32.totalorder %v665, 1
      %vm672 = vcmp.eq.s32.totalorder %v666, 1
      %vm673 = vcmp.eq.s32.totalorder %v667, 1
      %vm674 = vcmp.eq.s32.totalorder %v668, 1
      %v675 = vsel %vm669, 0.0, %v661
      %v676 = vsel %vm670, 0.0, %v660
      %v677 = vsel %vm671, 0.0, %v659
      %v678 = vsel %vm672, 0.0, %v658
      %v679 = vsel %vm673, 0.0, %v657
      %v680 = vsel %vm674, 0.0, %v662
      %v681 = vpack.c.bf16 %v639, %v638
      %v682 = vpack.c.bf16 %v641, %v640
      %v683 = vpack.c.bf16 %v643, %v642
      %v684 = vpack.c.bf16 %v501, %v500
      %v685 = vpack.c.bf16 %v475, %v474
      %v686 = vpack.c.bf16 %v527, %v526
      %v687 = vpack.c.bf16 %v676, %v675
      %v688 = vpack.c.bf16 %v678, %v677
      %v689 = vpack.c.bf16 %v680, %v679
      %693 = vrot.lane.b32.xlu0 %v684, 4
      %v694 = vpop.permute.xlu0 %693
      %695 = vrot.lane.b32.xlu0 %v685, 4
      %v696 = vpop.permute.xlu0 %695
      %697 = vrot.lane.b32.xlu0 %v686, 4
      %v698 = vpop.permute.xlu0 %697
      %702 = vrot.lane.b32.xlu0 %v687, 8
      %v703 = vpop.permute.xlu0 %702
      %704 = vrot.lane.b32.xlu0 %v688, 8
      %v705 = vpop.permute.xlu0 %704
      %706 = vrot.lane.b32.xlu0 %v689, 8
      %v707 = vpop.permute.xlu0 %706
      %vm708 = vcmask 31744
      %v711 = vsel %vm708, %v681, %v694
      %v714 = vsel %vm708, %v682, %v696
      %v717 = vsel %vm708, %v683, %v698
      %vm718 = vcmask 64512
      %v720 = vsel %vm718, %v711, %v703
      %v722 = vsel %vm718, %v714, %v705
      %v724 = vsel %vm718, %v717, %v707
      %v725 = vld [vmem:[%s3] sm:$0xf]
      %v726 = vld [vmem:[%s3 + $0x4] sm:$0x3]
      %s727 = scalar_lea.vmem %s3, 8
      %v728 = vld [vmem:[%s727] sm:$0xf]
      %v729 = vld [vmem:[%s727 + $0x4] sm:$0x3]
      %vm733 = vcmask 1043456
      %v734 = vrot.slane %v720, 4
      %v735 = vrot.slane %v722, 4
      %v736 = vsel %vm733, %v734, %v735
      %v737 = vrot.slane %v724, 4
      %v738 = vsel %vm733, %v735, %v737
      %v741 = vunpack.c.l.b16 %v728
      %v742 = vunpack.c.l.b16 %v729
      %v743 = vpack.c.b16 %v742, %v741
      %vm744 = vcmask 97280
      %v746 = vsel %vm744, %v736, 0
      %v749 = vsel %vm744, %v738, 0
      %vm751 = vcmask 1045504
      %v753 = vsel %vm751, %v743, 0
      %755 = vmatprep.subr.bf16.mxu0 0
      %756 = vmatpush1.bf16.msra.mxu0 %v753
      %757 = vmatprep.subr.bf16.mxu0 0
      %758 = vmatpush1.bf16.msra.mxu0 0
      %759 = vmatprep.subr.bf16.mxu0 0
      %760 = vmatpush1.bf16.msra.mxu0 0
      %761 = vmatprep.subr.bf16.mxu0 0
      %762 = vmatpush1.bf16.msra.mxu0 0
      %763 = vmatprep.subr.bf16.mxu0 0
      %764 = vmatpush1.bf16.msra.mxu0 0
      %765 = vmatprep.subr.bf16.mxu0 0
      %766 = vmatpush1.bf16.msra.mxu0 0
      %767 = vmatprep.subr.bf16.mxu0 0
      %768 = vmatpush1.bf16.msra.mxu0 0
      %769 = vmatprep.subr.bf16.mxu0 0
      %770 = vmatpush1.bf16.msra.mxu0 0
      %771 = vmatprep.subr.bf16.mxu0 0
      %772 = vmatpush1.bf16.msra.mxu0 0
      %773 = vmatprep.subr.bf16.mxu0 0
      %774 = vmatpush1.bf16.msra.mxu0 0
      %775 = vmatprep.subr.bf16.mxu0 0
      %776 = vmatpush1.bf16.msra.mxu0 0
      %777 = vmatprep.subr.bf16.mxu0 0
      %778 = vmatpush1.bf16.msra.mxu0 0
      %779 = vmatprep.subr.bf16.mxu0 0
      %780 = vmatpush1.bf16.msra.mxu0 0
      %781 = vmatprep.subr.bf16.mxu0 0
      %782 = vmatpush1.bf16.msra.mxu0 0
      %783 = vmatprep.subr.bf16.mxu0 0
      %784 = vmatpush1.bf16.msra.mxu0 0
      %785 = vmatprep.subr.bf16.mxu0 0
      %786 = vmatpush1.bf16.msra.mxu0 0
      %787 = vmatprep.mubr.bf16.mxu0 0
      %788 = vmatmul.mubr.bf16.gmra.mrb[0].mxu0 %v746
      %v789 = vpop.f32.mrb[0].mxu0
      %v790 = vadd.f32 0.0, %v789
      %v791 = vpop.f32.mrb[0].mxu0
      %v792 = vpop.f32.mrb[0].mxu0
      %v793 = vadd.f32 0.0, %v792
      %v794 = vpop.f32.mrb[0].mxu0
      %795 = vmatprep.mubr.bf16.mxu0 0
      %796 = vmatmul.mubr.bf16.gmra.mrb[0].mxu0 %v749
      %v797 = vpop.f32.mrb[0].mxu0
      %v798 = vadd.f32 0.0, %v797
      %v799 = vpop.f32.mrb[0].mxu0
      %v800 = vpop.f32.mrb[0].mxu0
      %v801 = vadd.f32 0.0, %v800
      %v802 = vpop.f32.mrb[0].mxu0
      %803 = vdwg.mxu0
      %v806 = vunpack.c.l.b16 %v725
      %v807 = vunpack.c.l.b16 %v726
      %v808 = vpack.c.b16 %v807, %v806
      %v809 = vsel %vm744, %v720, 0
      %v811 = vsel %vm744, %v722, 0
      %v814 = vsel %vm751, %v808, 0
      %816 = vmatprep.subr.bf16.mxu0 0
      %817 = vmatpush1.bf16.msra.mxu0 %v814
      %818 = vmatprep.subr.bf16.mxu0 0
      %819 = vmatpush1.bf16.msra.mxu0 0
      %820 = vmatprep.subr.bf16.mxu0 0
      %821 = vmatpush1.bf16.msra.mxu0 0
      %822 = vmatprep.subr.bf16.mxu0 0
      %823 = vmatpush1.bf16.msra.mxu0 0
      %824 = vmatprep.subr.bf16.mxu0 0
      %825 = vmatpush1.bf16.msra.mxu0 0
      %826 = vmatprep.subr.bf16.mxu0 0
      %827 = vmatpush1.bf16.msra.mxu0 0
      %828 = vmatprep.subr.bf16.mxu0 0
      %829 = vmatpush1.bf16.msra.mxu0 0
      %830 = vmatprep.subr.bf16.mxu0 0
      %831 = vmatpush1.bf16.msra.mxu0 0
      %832 = vmatprep.subr.bf16.mxu0 0
      %833 = vmatpush1.bf16.msra.mxu0 0
      %834 = vmatprep.subr.bf16.mxu0 0
      %835 = vmatpush1.bf16.msra.mxu0 0
      %836 = vmatprep.subr.bf16.mxu0 0
      %837 = vmatpush1.bf16.msra.mxu0 0
      %838 = vmatprep.subr.bf16.mxu0 0
      %839 = vmatpush1.bf16.msra.mxu0 0
      %840 = vmatprep.subr.bf16.mxu0 0
      %841 = vmatpush1.bf16.msra.mxu0 0
      %842 = vmatprep.subr.bf16.mxu0 0
      %843 = vmatpush1.bf16.msra.mxu0 0
      %844 = vmatprep.subr.bf16.mxu0 0
      %845 = vmatpush1.bf16.msra.mxu0 0
      %846 = vmatprep.subr.bf16.mxu0 0
      %847 = vmatpush1.bf16.msra.mxu0 0
      %848 = vmatprep.mubr.bf16.mxu0 0
      %849 = vmatmul.mubr.bf16.gmra.mrb[0].mxu0 %v809
      %v850 = vpop.f32.mrb[0].mxu0
      %v851 = vadd.f32 %v790, %v850
      %v852 = vpop.f32.mrb[0].mxu0
      %v853 = vpop.f32.mrb[0].mxu0
      %v854 = vadd.f32 %v793, %v853
      %v855 = vpop.f32.mrb[0].mxu0
      %856 = vmatprep.mubr.bf16.mxu0 0
      %857 = vmatmul.mubr.bf16.gmra.mrb[0].mxu0 %v811
      %v858 = vpop.f32.mrb[0].mxu0
      %v859 = vadd.f32 %v798, %v858
      %v860 = vpop.f32.mrb[0].mxu0
      %v861 = vpop.f32.mrb[0].mxu0
      %v862 = vadd.f32 %v801, %v861
      %v863 = vpop.f32.mrb[0].mxu0
      %864 = vdwg.mxu0
      %s865 = scalar_lea.vmem %s3, 16
      %v866 = vld [vmem:[%s865] sm:$0xf]
      %v867 = vld [vmem:[%s865 + $0x4] sm:$0x3]
      %v870 = vunpack.c.l.b16 %v866
      %v871 = vunpack.c.l.b16 %v867
      %v872 = vpack.c.b16 %v871, %v870
      %v873 = vsel %vm744, %v724, 0
      %v876 = vsel %vm751, %v872, 0
      %878 = vmatprep.subr.bf16.mxu0 0
      %879 = vmatpush1.bf16.msra.mxu0 %v876
      %880 = vmatprep.subr.bf16.mxu0 0
      %881 = vmatpush1.bf16.msra.mxu0 0
      %882 = vmatprep.subr.bf16.mxu0 0
      %883 = vmatpush1.bf16.msra.mxu0 0
      %884 = vmatprep.subr.bf16.mxu0 0
      %885 = vmatpush1.bf16.msra.mxu0 0
      %886 = vmatprep.subr.bf16.mxu0 0
      %887 = vmatpush1.bf16.msra.mxu0 0
      %888 = vmatprep.subr.bf16.mxu0 0
      %889 = vmatpush1.bf16.msra.mxu0 0
      %890 = vmatprep.subr.bf16.mxu0 0
      %891 = vmatpush1.bf16.msra.mxu0 0
      %892 = vmatprep.subr.bf16.mxu0 0
      %893 = vmatpush1.bf16.msra.mxu0 0
      %894 = vmatprep.subr.bf16.mxu0 0
      %895 = vmatpush1.bf16.msra.mxu0 0
      %896 = vmatprep.subr.bf16.mxu0 0
      %897 = vmatpush1.bf16.msra.mxu0 0
      %898 = vmatprep.subr.bf16.mxu0 0
      %899 = vmatpush1.bf16.msra.mxu0 0
      %900 = vmatprep.subr.bf16.mxu0 0
      %901 = vmatpush1.bf16.msra.mxu0 0
      %902 = vmatprep.subr.bf16.mxu0 0
      %903 = vmatpush1.bf16.msra.mxu0 0
      %904 = vmatprep.subr.bf16.mxu0 0
      %905 = vmatpush1.bf16.msra.mxu0 0
      %906 = vmatprep.subr.bf16.mxu0 0
      %907 = vmatpush1.bf16.msra.mxu0 0
      %908 = vmatprep.subr.bf16.mxu0 0
      %909 = vmatpush1.bf16.msra.mxu0 0
      %910 = vmatprep.mubr.bf16.mxu0 0
      %911 = vmatmul.mubr.bf16.gmra.mrb[0].mxu0 %v811
      %v912 = vpop.f32.mrb[0].mxu0
      %v913 = vadd.f32 0.0, %v912
      %v914 = vpop.f32.mrb[0].mxu0
      %v915 = vpop.f32.mrb[0].mxu0
      %v916 = vadd.f32 0.0, %v915
      %v917 = vpop.f32.mrb[0].mxu0
      %918 = vmatprep.mubr.bf16.mxu0 0
      %919 = vmatmul.mubr.bf16.gmra.mrb[0].mxu0 %v873
      %v920 = vpop.f32.mrb[0].mxu0
      %v921 = vadd.f32 0.0, %v920
      %v922 = vpop.f32.mrb[0].mxu0
      %v923 = vpop.f32.mrb[0].mxu0
      %v924 = vadd.f32 0.0, %v923
      %v925 = vpop.f32.mrb[0].mxu0
      %926 = vdwg.mxu0
      %v927 = vadd.f32 %v851, %v913
      %v928 = vadd.f32 %v854, %v916
      %v929 = vadd.f32 %v859, %v921
      %v930 = vadd.f32 %v862, %v924
      %v931 = vld [vmem:[%s4] sm:$0x1]
      %v933 = vlaneseq
      %v934 = vshrl.u32 %v933, 7
      %v935 = vsub.s32 0, %v934
      %v936 = vrot.slane %v931, %v935
      %v938 = vadd.f32 %v927, %v936
      %v939 = vadd.f32 %v928, %v936
      %v940 = vadd.f32 %v929, %v936
      %v941 = vadd.f32 %v930, %v936
      %v942 = vmax.f32 %v938, 0.0
      %v943 = vmax.f32 %v939, 0.0
      %v944 = vmax.f32 %v940, 0.0
      %v945 = vmax.f32 %v941, 0.0
      %p946 = scmp.eq.s32.totalorder %s23, 0
      %vm947 = vcmp.lt.s32.totalorder %v529, 8
      %vm948 = vcmp.lt.s32.totalorder %v530, 8
      %vm949 = vcmp.lt.s32.totalorder %v531, 8
      %vm950 = vcmp.lt.s32.totalorder %v532, 8
      %s951 = scalar_select %p946, 1, 0
      %v952 = vstv %s951
      %vm953 = vcmp.eq.s32.totalorder %v952, 1
      %vm954 = vmand %vm953, %vm947
      %vm955 = vmand %vm953, %vm948
      %vm956 = vmand %vm953, %vm949
      %vm957 = vmand %vm953, %vm950
      %p958 = scmp.eq.s32.totalorder %s23, 3
      %vm959 = vcmp.ge.s32.totalorder %v529, 24
      %vm960 = vcmp.ge.s32.totalorder %v530, 24
      %vm961 = vcmp.ge.s32.totalorder %v531, 24
      %vm962 = vcmp.ge.s32.totalorder %v532, 24
      %s963 = scalar_select %p958, 1, 0
      %v964 = vstv %s963
      %vm965 = vcmp.eq.s32.totalorder %v964, 1
      %vm966 = vmand %vm965, %vm959
      %vm967 = vmand %vm965, %vm960
      %vm968 = vmand %vm965, %vm961
      %vm969 = vmand %vm965, %vm962
      %vm970 = vmor %vm954, %vm966
      %vm971 = vmor %vm955, %vm967
      %vm972 = vmor %vm956, %vm968
      %vm973 = vmor %vm957, %vm969
      %v974 = vsel %vm970, 1, 0
      %v975 = vsel %vm971, 1, 0
      %v976 = vsel %vm972, 1, 0
      %v977 = vsel %vm973, 1, 0
      %vm978 = vcmp.eq.s32.totalorder %v974, 1
      %vm979 = vcmp.eq.s32.totalorder %v975, 1
      %vm980 = vcmp.eq.s32.totalorder %v976, 1
      %vm981 = vcmp.eq.s32.totalorder %v977, 1
      %v982 = vsel %vm978, 0.0, %v942
      %v983 = vsel %vm979, 0.0, %v943
      %v984 = vsel %vm980, 0.0, %v944
      %v985 = vsel %vm981, 0.0, %v945
      %v986 = vrot.slane %v982, 7
      %v987 = vrot.slane %v983, 7
      %v988 = vrot.slane %v984, 7
      %v989 = vrot.slane %v985, 7
      %v990 = vsel %vm619, %v988, %v989
      %v991 = vsel %vm619, %v987, %v988
      %v992 = vsel %vm619, %v986, %v987
      %v993 = vsel %vm619, %v989, %v986
      %v994 = vsel %vm632, 0.0, %v993
      %v995 = vsel %vm633, 0.0, %v992
      %v996 = vsel %vm634, 0.0, %v991
      %v997 = vsel %vm635, 0.0, %v990
      %v998 = vrot.slane %v982, 1
      %v999 = vrot.slane %v983, 1
      %v1000 = vrot.slane %v984, 1
      %v1001 = vrot.slane %v985, 1
      %v1002 = vsel %vm656, %v1000, %v1001
      %v1003 = vsel %vm656, %v999, %v1000
      %v1004 = vsel %vm656, %v998, %v999
      %v1005 = vsel %vm656, %v1001, %v998
      %v1006 = vsel %vm669, 0.0, %v1004
      %v1007 = vsel %vm670, 0.0, %v1003
      %v1008 = vsel %vm671, 0.0, %v1002
      %v1009 = vsel %vm672, 0.0, %v1005
      %v1010 = vpack.c.bf16 %v995, %v994
      %v1011 = vpack.c.bf16 %v997, %v996
      %v1012 = vpack.c.bf16 %v983, %v982
      %v1013 = vpack.c.bf16 %v985, %v984
      %v1014 = vpack.c.bf16 %v1007, %v1006
      %v1015 = vpack.c.bf16 %v1009, %v1008
      %1018 = vrot.lane.b32.xlu0 %v1012, 8
      %v1019 = vpop.permute.xlu0 %1018
      %1020 = vrot.lane.b32.xlu0 %v1013, 8
      %v1021 = vpop.permute.xlu0 %1020
      %1024 = vrot.lane.b32.xlu0 %v1014, 16
      %v1025 = vpop.permute.xlu0 %1024
      %1026 = vrot.lane.b32.xlu0 %v1015, 16
      %v1027 = vpop.permute.xlu0 %1026
      %v1030 = vsel %vm718, %v1010, %v1019
      %v1033 = vsel %vm718, %v1011, %v1021
      %vm1034 = vcmask 130048
      %v1036 = vsel %vm1034, %v1030, %v1025
      %v1038 = vsel %vm1034, %v1033, %v1027
      %v1039 = vld [vmem:[%s5] sm:$0xf]
      %v1040 = vld [vmem:[%s5 + $0x4] sm:$0xf]
      %v1041 = vld [vmem:[%s5 + $0x8] sm:$0xf]
      %s1042 = scalar_lea.vmem %s5, 12
      %v1043 = vld [vmem:[%s1042] sm:$0xf]
      %v1044 = vld [vmem:[%s1042 + $0x4] sm:$0xf]
      %v1045 = vld [vmem:[%s1042 + $0x8] sm:$0xf]
      %v1048 = vrot.slane %v1036, 4
      %v1049 = vrot.slane %v1038, 4
      %v1050 = vsel %vm733, %v1048, %v1049
      %v1054 = vunpack.c.l.b16 %v1043
      %v1055 = vunpack.c.l.b16 %v1044
      %v1056 = vunpack.c.l.b16 %v1045
      %v1057 = vpack.c.b16 %v1055, %v1054
      %v1058 = vpack.c.b16 %v1056, %v1056
      %vm1060 = vcmask 195584
      %v1062 = vsel %vm1060, %v1050, 0
      %vm1064 = vcmask 1043456
      %v1066 = vsel %vm1064, %v1058, 0
      %1068 = vmatprep.subr.bf16.mxu0 0
      %1069 = vmatpush1.bf16.msra.mxu0 %v1057
      %1070 = vmatprep.subr.bf16.mxu0 0
      %1071 = vmatpush1.bf16.msra.mxu0 %v1066
      %1072 = vmatprep.subr.bf16.mxu0 0
      %1073 = vmatpush1.bf16.msra.mxu0 0
      %1074 = vmatprep.subr.bf16.mxu0 0
      %1075 = vmatpush1.bf16.msra.mxu0 0
      %1076 = vmatprep.subr.bf16.mxu0 0
      %1077 = vmatpush1.bf16.msra.mxu0 0
      %1078 = vmatprep.subr.bf16.mxu0 0
      %1079 = vmatpush1.bf16.msra.mxu0 0
      %1080 = vmatprep.subr.bf16.mxu0 0
      %1081 = vmatpush1.bf16.msra.mxu0 0
      %1082 = vmatprep.subr.bf16.mxu0 0
      %1083 = vmatpush1.bf16.msra.mxu0 0
      %1084 = vmatprep.subr.bf16.mxu0 0
      %1085 = vmatpush1.bf16.msra.mxu0 0
      %1086 = vmatprep.subr.bf16.mxu0 0
      %1087 = vmatpush1.bf16.msra.mxu0 0
      %1088 = vmatprep.subr.bf16.mxu0 0
      %1089 = vmatpush1.bf16.msra.mxu0 0
      %1090 = vmatprep.subr.bf16.mxu0 0
      %1091 = vmatpush1.bf16.msra.mxu0 0
      %1092 = vmatprep.subr.bf16.mxu0 0
      %1093 = vmatpush1.bf16.msra.mxu0 0
      %1094 = vmatprep.subr.bf16.mxu0 0
      %1095 = vmatpush1.bf16.msra.mxu0 0
      %1096 = vmatprep.subr.bf16.mxu0 0
      %1097 = vmatpush1.bf16.msra.mxu0 0
      %1098 = vmatprep.subr.bf16.mxu0 0
      %1099 = vmatpush1.bf16.msra.mxu0 0
      %1100 = vmatprep.mubr.bf16.mxu0 0
      %1101 = vmatmul.mubr.bf16.gmra.mrb[0].mxu0 %v1062
      %v1102 = vpop.f32.mrb[0].mxu0
      %v1103 = vadd.f32 0.0, %v1102
      %v1104 = vpop.f32.mrb[0].mxu0
      %v1105 = vpop.f32.mrb[0].mxu0
      %v1106 = vadd.f32 0.0, %v1105
      %v1107 = vpop.f32.mrb[0].mxu0
      %1108 = vdwg.mxu0
      %v1112 = vunpack.c.l.b16 %v1039
      %v1113 = vunpack.c.l.b16 %v1040
      %v1114 = vunpack.c.l.b16 %v1041
      %v1115 = vpack.c.b16 %v1113, %v1112
      %v1116 = vpack.c.b16 %v1114, %v1114
      %v1118 = vsel %vm1060, %v1036, 0
      %v1121 = vsel %vm1064, %v1116, 0
      %1123 = vmatprep.subr.bf16.mxu0 0
      %1124 = vmatpush1.bf16.msra.mxu0 %v1115
      %1125 = vmatprep.subr.bf16.mxu0 0
      %1126 = vmatpush1.bf16.msra.mxu0 %v1121
      %1127 = vmatprep.subr.bf16.mxu0 0
      %1128 = vmatpush1.bf16.msra.mxu0 0
      %1129 = vmatprep.subr.bf16.mxu0 0
      %1130 = vmatpush1.bf16.msra.mxu0 0
      %1131 = vmatprep.subr.bf16.mxu0 0
      %1132 = vmatpush1.bf16.msra.mxu0 0
      %1133 = vmatprep.subr.bf16.mxu0 0
      %1134 = vmatpush1.bf16.msra.mxu0 0
      %1135 = vmatprep.subr.bf16.mxu0 0
      %1136 = vmatpush1.bf16.msra.mxu0 0
      %1137 = vmatprep.subr.bf16.mxu0 0
      %1138 = vmatpush1.bf16.msra.mxu0 0
      %1139 = vmatprep.subr.bf16.mxu0 0
      %1140 = vmatpush1.bf16.msra.mxu0 0
      %1141 = vmatprep.subr.bf16.mxu0 0
      %1142 = vmatpush1.bf16.msra.mxu0 0
      %1143 = vmatprep.subr.bf16.mxu0 0
      %1144 = vmatpush1.bf16.msra.mxu0 0
      %1145 = vmatprep.subr.bf16.mxu0 0
      %1146 = vmatpush1.bf16.msra.mxu0 0
      %1147 = vmatprep.subr.bf16.mxu0 0
      %1148 = vmatpush1.bf16.msra.mxu0 0
      %1149 = vmatprep.subr.bf16.mxu0 0
      %1150 = vmatpush1.bf16.msra.mxu0 0
      %1151 = vmatprep.subr.bf16.mxu0 0
      %1152 = vmatpush1.bf16.msra.mxu0 0
      %1153 = vmatprep.subr.bf16.mxu0 0
      %1154 = vmatpush1.bf16.msra.mxu0 0
      %1155 = vmatprep.mubr.bf16.mxu0 0
      %1156 = vmatmul.mubr.bf16.gmra.mrb[0].mxu0 %v1118
      %v1157 = vpop.f32.mrb[0].mxu0
      %v1158 = vadd.f32 %v1103, %v1157
      %v1159 = vpop.f32.mrb[0].mxu0
      %v1160 = vpop.f32.mrb[0].mxu0
      %v1161 = vadd.f32 %v1106, %v1160
      %v1162 = vpop.f32.mrb[0].mxu0
      %1163 = vdwg.mxu0
      %s1164 = scalar_lea.vmem %s5, 24
      %v1165 = vld [vmem:[%s1164] sm:$0xf]
      %v1166 = vld [vmem:[%s1164 + $0x4] sm:$0xf]
      %v1167 = vld [vmem:[%s1164 + $0x8] sm:$0xf]
      %v1171 = vunpack.c.l.b16 %v1165
      %v1172 = vunpack.c.l.b16 %v1166
      %v1173 = vunpack.c.l.b16 %v1167
      %v1174 = vpack.c.b16 %v1172, %v1171
      %v1175 = vpack.c.b16 %v1173, %v1173
      %v1177 = vsel %vm1060, %v1038, 0
      %v1180 = vsel %vm1064, %v1175, 0
      %1182 = vmatprep.subr.bf16.mxu0 0
      %1183 = vmatpush1.bf16.msra.mxu0 %v1174
      %1184 = vmatprep.subr.bf16.mxu0 0
      %1185 = vmatpush1.bf16.msra.mxu0 %v1180
      %1186 = vmatprep.subr.bf16.mxu0 0
      %1187 = vmatpush1.bf16.msra.mxu0 0
      %1188 = vmatprep.subr.bf16.mxu0 0
      %1189 = vmatpush1.bf16.msra.mxu0 0
      %1190 = vmatprep.subr.bf16.mxu0 0
      %1191 = vmatpush1.bf16.msra.mxu0 0
      %1192 = vmatprep.subr.bf16.mxu0 0
      %1193 = vmatpush1.bf16.msra.mxu0 0
      %1194 = vmatprep.subr.bf16.mxu0 0
      %1195 = vmatpush1.bf16.msra.mxu0 0
      %1196 = vmatprep.subr.bf16.mxu0 0
      %1197 = vmatpush1.bf16.msra.mxu0 0
      %1198 = vmatprep.subr.bf16.mxu0 0
      %1199 = vmatpush1.bf16.msra.mxu0 0
      %1200 = vmatprep.subr.bf16.mxu0 0
      %1201 = vmatpush1.bf16.msra.mxu0 0
      %1202 = vmatprep.subr.bf16.mxu0 0
      %1203 = vmatpush1.bf16.msra.mxu0 0
      %1204 = vmatprep.subr.bf16.mxu0 0
      %1205 = vmatpush1.bf16.msra.mxu0 0
      %1206 = vmatprep.subr.bf16.mxu0 0
      %1207 = vmatpush1.bf16.msra.mxu0 0
      %1208 = vmatprep.subr.bf16.mxu0 0
      %1209 = vmatpush1.bf16.msra.mxu0 0
      %1210 = vmatprep.subr.bf16.mxu0 0
      %1211 = vmatpush1.bf16.msra.mxu0 0
      %1212 = vmatprep.subr.bf16.mxu0 0
      %1213 = vmatpush1.bf16.msra.mxu0 0
      %1214 = vmatprep.mubr.bf16.mxu0 0
      %1215 = vmatmul.mubr.bf16.gmra.mrb[0].mxu0 %v1177
      %v1216 = vpop.f32.mrb[0].mxu0
      %v1217 = vadd.f32 0.0, %v1216
      %v1218 = vpop.f32.mrb[0].mxu0
      %v1219 = vpop.f32.mrb[0].mxu0
      %v1220 = vadd.f32 0.0, %v1219
      %v1221 = vpop.f32.mrb[0].mxu0
      %1222 = vdwg.mxu0
      %v1223 = vadd.f32 %v1158, %v1217
      %v1224 = vadd.f32 %v1161, %v1220
      %v1225 = vld [vmem:[%s6] sm:$0x1]
      %v1227 = vlaneseq
      %v1228 = vshrl.u32 %v1227, 7
      %v1229 = vsub.s32 0, %v1228
      %v1230 = vrot.slane %v1225, %v1229
      %v1232 = vadd.f32 %v1223, %v1230
      %v1233 = vadd.f32 %v1224, %v1230
      %v1234 = vmax.f32 %v1232, 0.0
      %v1235 = vmax.f32 %v1233, 0.0
      %1236 = vst.msk [vmem:[%s453] sm:$0xff] %vm718, %v1234
      %1237 = vst.msk [vmem:[%s453 + $0x8] sm:$0xff] %vm718, %v1235
      %s1238 = smul.u32 2, %s23
      %p1239 = scmp.lt.s32.totalorder %s22, 1
      %s1240 = scalar_select %p1239, %s22, 1
      %p1241 = scmp.lt.s32.totalorder %s1238, 7
      %s1242 = scalar_select %p1241, %s1238, 7
      %s1243 = smul.addr %s1240, 8
      %s1244 = sadd.s32 %s1242, %s1243
      %s1245 = smul.addr %s1244, 8
      %s1246 = scalar_lea.vmem %s7, %s1245
      // Predicated region
      $region49: #{down_forward.1} parent=47 // pred_check
        %p1247 = pneg %p234
      $region50: #{down_forward.1} parent=47 // pred_check_branch
        %1249 = sbr.rel (%p1247) target = $region52
      $region51: #{down_forward.1} parent=47 // pred_region
        %s1250 = smul.u32 2, %s23
      $region52: #{down_forward.1} parent=47 // pred_fallthru
        _
    $region48: #{down_forward.1} parent=5 // pred_fallthru
      _
    %p1251 = scmp.le.s32.totalorder 2, %s13
    // Predicated region
    $region53: #{down_forward.1} parent=5 // pred_check
      %p1252 = pneg %p1251
    $region54: #{down_forward.1} parent=5 // pred_check_branch
      %1254 = sbr.rel (%p1252) target = $region56
    $region55: #{down_forward.1} parent=5 // pred_region
      %s1255 = ssub.s32 %s13, 2
      // Predicated region
      $region57: #{down_forward.1} parent=55 // pred_check
        %p1256 = pneg %p240
      $region58: #{down_forward.1} parent=55 // pred_check_branch
        %1258 = sbr.rel (%p1256) target = $region60
      $region59: #{down_forward.1} parent=55 // pred_region
        %s1259 = smul.u32 2, %s25
        %p1260 = scmp.lt.s32.totalorder %s24, 1
        %s1261 = scalar_select %p1260, %s24, 1
        %p1262 = scmp.lt.s32.totalorder %s1259, 7
        %s1263 = scalar_select %p1262, %s1259, 7
        %s1264 = smul.addr %s1261, 8
        %s1265 = sadd.s32 %s1263, %s1264
        %s1266 = smul.addr %s1265, 8
        %s1267 = scalar_lea.vmem %s7, %s1266
      $region60: #{down_forward.1} parent=55 // pred_fallthru
        _
    $region56: #{down_forward.1} parent=5 // pred_fallthru
      _
  $region6: #{down_forward.1} parent=0 // loop_footer
    %s17 = sadd.s32 1, %s13
  $region7: #{down_forward.1} parent=0 // loop_footer_branch
    %12 = sbr.rel target = $region3
  $region8: #{down_forward.1} parent=0 // loop_exit
    _

</llo_original>
